<compile_context>
chip_gen: v5e
topology: v5e:2x2
jax: 0.10.0
libtpu: 0.0.40
codegen_flags: <defaults>
</compile_context>

<pallas_src>
import jax
import jax.numpy as jnp
from jax.experimental import pallas as pl
from jax.experimental.pallas import tpu as pltpu

# Module constants (from efficientnet_b7_148.py)
C = 2304            # channels (depthwise groups)
H = W = 7           # spatial size
KH = KW = 5         # kernel size
PAD = 2             # padding
EPS = 1e-3          # BatchNorm eps
TC = 384            # channel tile (lane dim, multiple of 128) -> grid = 6 parallel steps
INV_HW = 1.0 / (H * W)


def _shift_cols(plane, delta, zero1, zero2):
    """Zero-filled shift of a (W, TC) plane along axis 0: out[j] = plane[j + delta]."""
    if delta == 0:
        return plane
    if delta > 0:
        pad = zero1 if delta == 1 else zero2
        return jnp.concatenate([plane[delta:, :], pad], axis=0)
    d = -delta
    pad = zero1 if d == 1 else zero2
    return jnp.concatenate([pad, plane[:W - d, :]], axis=0)


def dwconv_bn_kernel(x_ref, w_ref, g_ref, b_ref, o_ref):
    """One channel tile of depthwise conv 5x5 + batch-norm (training stats).

    x_ref: (H, W, TC)   unpadded input, channels-last, f32
    w_ref: (KH*KW, TC)  depthwise filter taps
    g_ref: (1, TC)      batchnorm gamma
    b_ref: (1, TC)      batchnorm beta
    o_ref: (H, W, TC)   output
    """
    zero1 = jnp.zeros((1, TC), jnp.float32)
    zero2 = jnp.zeros((2, TC), jnp.float32)

    # Per-output-row accumulators (each (W, TC)).  The kh offsets never move data:
    # a given input row simply accumulates into the output rows it contributes to.
    acc = [jnp.zeros((W, TC), jnp.float32) for _ in range(H)]

    for kw in range(KW):
        delta = kw - PAD
        # Hoist + broadcast the 5 taps of this filter column once per grid step.
        taps = [jnp.broadcast_to(w_ref[kh * KW + kw, :], (W, TC)) for kh in range(KH)]
        for h in range(H):                               # input row index
            s = _shift_cols(x_ref[h], delta, zero1, zero2)   # (W, TC), zero-padded cols
            for kh in range(KH):
                i = h - kh + PAD                         # output row this tap feeds
                if 0 <= i < H:                           # rows outside => zero padding
                    acc[i] = acc[i] + s * taps[kh]

    # BatchNorm2d in training mode: per-channel mean / biased variance over N*H*W
    # (N == 1), folded affine: y = acc * scale + shift.
    t1 = acc[0]
    t2 = acc[0] * acc[0]
    for i in range(1, H):
        t1 = t1 + acc[i]
        t2 = t2 + acc[i] * acc[i]
    s1 = jnp.sum(t1, axis=0, keepdims=True)              # (1, TC)
    s2 = jnp.sum(t2, axis=0, keepdims=True)              # (1, TC)
    mean = s1 * INV_HW
    var = s2 * INV_HW - mean * mean                      # biased variance
    inv = jax.lax.rsqrt(var + EPS)
    scale = inv * g_ref[...]                             # (1, TC)
    shift = b_ref[...] - mean * scale                    # (1, TC)
    scale_b = jnp.broadcast_to(scale, (W, TC))           # hoisted broadcasts
    shift_b = jnp.broadcast_to(shift, (W, TC))
    for i in range(H):
        o_ref[i] = (acc[i] * scale_b + shift_b).astype(o_ref.dtype)


@jax.jit
def dwconv_bn(x_nchw, weight, gamma, beta):
    """x_nchw: (1, C, H, W); weight: (C, 1, KH, KW); gamma/beta: (C,)."""
    assert x_nchw.shape == (1, C, H, W)
    # Single layout pass in: NCHW -> HWC (N == 1); no padding pass (done in-kernel).
    x_hwc = jnp.transpose(x_nchw[0], (1, 2, 0)).astype(jnp.float32)    # (H, W, C)
    w_taps = weight.reshape(C, KH * KW).T.astype(jnp.float32)          # (25, C)
    g2 = gamma.reshape(1, C).astype(jnp.float32)
    b2 = beta.reshape(1, C).astype(jnp.float32)

    out_hwc = pl.pallas_call(
        dwconv_bn_kernel,
        out_shape=jax.ShapeDtypeStruct((H, W, C), jnp.float32),
        grid_spec=pltpu.PrefetchScalarGridSpec(
            num_scalar_prefetch=0,
            grid=(C // TC,),
            in_specs=[
                pl.BlockSpec((H, W, TC), lambda c: (0, 0, c)),
                pl.BlockSpec((KH * KW, TC), lambda c: (0, c)),
                pl.BlockSpec((1, TC), lambda c: (0, c)),
                pl.BlockSpec((1, TC), lambda c: (0, c)),
            ],
            out_specs=pl.BlockSpec((H, W, TC), lambda c: (0, 0, c)),
        ),
        compiler_params=pltpu.CompilerParams(
            dimension_semantics=("parallel",)),
    )(x_hwc, w_taps, g2, b2)

    # Single layout pass out: HWC -> NCHW.
    return jnp.transpose(out_hwc, (2, 0, 1))[None, ...]


@jax.jit
def reference(x_nchw, weight, gamma, beta):
    """Pure-JAX reference (depthwise conv + training-mode batch norm)."""
    y = jax.lax.conv_general_dilated(
        x_nchw.astype(jnp.float32), weight.astype(jnp.float32),
        window_strides=(1, 1), padding=((PAD, PAD), (PAD, PAD)),
        feature_group_count=C,
        dimension_numbers=("NCHW", "OIHW", "NCHW"))
    mean = jnp.mean(y, axis=(0, 2, 3), keepdims=True)
    var = jnp.mean((y - mean) ** 2, axis=(0, 2, 3), keepdims=True)
    yhat = (y - mean) * jax.lax.rsqrt(var + EPS)
    return yhat * gamma.reshape(1, C, 1, 1) + beta.reshape(1, C, 1, 1)


if __name__ == "__main__":
    key = jax.random.PRNGKey(0)
    kx, kw_, kg, kb = jax.random.split(key, 4)
    x = jax.random.normal(kx, (1, C, H, W), dtype=jnp.float32)
    weight = jax.random.normal(kw_, (C, 1, KH, KW), dtype=jnp.float32) * 0.1
    gamma = 1.0 + 0.1 * jax.random.normal(kg, (C,), dtype=jnp.float32)
    beta = 0.1 * jax.random.normal(kb, (C,), dtype=jnp.float32)

    out = jax.block_until_ready(dwconv_bn(x, weight, gamma, beta))
    ref = jax.block_until_ready(reference(x, weight, gamma, beta))

    assert out.shape == (1, C, H, W), out.shape
    err = float(jnp.max(jnp.abs(out - ref)))
    assert err < 1e-3, f"max abs error {err}"
    print("KERNEL_OK")
</pallas_src>

<mosaic_0001>
module attributes {stable_mosaic.version = 11 : i64} {
  func.func @dwconv_bn_kernel(%arg0: i32, %arg1: memref<7x7x384xf32, #tpu.memory_space<vmem>>, %arg2: memref<25x384xf32, #tpu.memory_space<vmem>>, %arg3: memref<1x384xf32, #tpu.memory_space<vmem>>, %arg4: memref<1x384xf32, #tpu.memory_space<vmem>>, %arg5: memref<7x7x384xf32, #tpu.memory_space<vmem>>) attributes {dimension_semantics = [#tpu.dimension_semantics<parallel>], iteration_bounds = array<i64: 6>, scalar_prefetch = 0 : i64, scratch_operands = 0 : i64, tpu.core_type = #tpu.core_type<tc>, window_params = [{transform_indices = @transform_0, window_bounds = array<i64: 7, 7, 384>}, {transform_indices = @transform_1, window_bounds = array<i64: 25, 384>}, {transform_indices = @transform_2, window_bounds = array<i64: 1, 384>}, {transform_indices = @transform_3, window_bounds = array<i64: 1, 384>}, {transform_indices = @transform_4, window_bounds = array<i64: 7, 7, 384>}]} {
    %cst = arith.constant 0.000000e+00 : f32
    %0 = vector.broadcast %cst : f32 to vector<1x384xf32>
    %cst_0 = arith.constant 0.000000e+00 : f32
    %1 = vector.broadcast %cst_0 : f32 to vector<2x384xf32>
    %cst_1 = arith.constant 0.000000e+00 : f32
    %2 = vector.broadcast %cst_1 : f32 to vector<7x384xf32>
    %cst_2 = arith.constant 0.000000e+00 : f32
    %3 = vector.broadcast %cst_2 : f32 to vector<7x384xf32>
    %cst_3 = arith.constant 0.000000e+00 : f32
    %4 = vector.broadcast %cst_3 : f32 to vector<7x384xf32>
    %cst_4 = arith.constant 0.000000e+00 : f32
    %5 = vector.broadcast %cst_4 : f32 to vector<7x384xf32>
    %cst_5 = arith.constant 0.000000e+00 : f32
    %6 = vector.broadcast %cst_5 : f32 to vector<7x384xf32>
    %cst_6 = arith.constant 0.000000e+00 : f32
    %7 = vector.broadcast %cst_6 : f32 to vector<7x384xf32>
    %cst_7 = arith.constant 0.000000e+00 : f32
    %8 = vector.broadcast %cst_7 : f32 to vector<7x384xf32>
    %c0 = arith.constant 0 : index
    %c0_8 = arith.constant 0 : index
    %9 = vector.load %arg2[%c0, %c0_8] : memref<25x384xf32, #tpu.memory_space<vmem>>, vector<1x384xf32>
    %10 = vector.shape_cast %9 : vector<1x384xf32> to vector<384xf32>
    %11 = vector.shape_cast %10 : vector<384xf32> to vector<1x384xf32>
    %12 = vector.broadcast %11 : vector<1x384xf32> to vector<7x384xf32>
    %c5 = arith.constant 5 : index
    %c0_9 = arith.constant 0 : index
    %13 = vector.load %arg2[%c5, %c0_9] : memref<25x384xf32, #tpu.memory_space<vmem>>, vector<1x384xf32>
    %14 = vector.shape_cast %13 : vector<1x384xf32> to vector<384xf32>
    %15 = vector.shape_cast %14 : vector<384xf32> to vector<1x384xf32>
    %16 = vector.broadcast %15 : vector<1x384xf32> to vector<7x384xf32>
    %c10 = arith.constant 10 : index
    %c0_10 = arith.constant 0 : index
    %17 = vector.load %arg2[%c10, %c0_10] : memref<25x384xf32, #tpu.memory_space<vmem>>, vector<1x384xf32>
    %18 = vector.shape_cast %17 : vector<1x384xf32> to vector<384xf32>
    %19 = vector.shape_cast %18 : vector<384xf32> to vector<1x384xf32>
    %20 = vector.broadcast %19 : vector<1x384xf32> to vector<7x384xf32>
    %c15 = arith.constant 15 : index
    %c0_11 = arith.constant 0 : index
    %21 = vector.load %arg2[%c15, %c0_11] : memref<25x384xf32, #tpu.memory_space<vmem>>, vector<1x384xf32>
    %22 = vector.shape_cast %21 : vector<1x384xf32> to vector<384xf32>
    %23 = vector.shape_cast %22 : vector<384xf32> to vector<1x384xf32>
    %24 = vector.broadcast %23 : vector<1x384xf32> to vector<7x384xf32>
    %c20 = arith.constant 20 : index
    %c0_12 = arith.constant 0 : index
    %25 = vector.load %arg2[%c20, %c0_12] : memref<25x384xf32, #tpu.memory_space<vmem>>, vector<1x384xf32>
    %26 = vector.shape_cast %25 : vector<1x384xf32> to vector<384xf32>
    %27 = vector.shape_cast %26 : vector<384xf32> to vector<1x384xf32>
    %28 = vector.broadcast %27 : vector<1x384xf32> to vector<7x384xf32>
    %c0_13 = arith.constant 0 : index
    %c0_14 = arith.constant 0 : index
    %c0_15 = arith.constant 0 : index
    %29 = vector.load %arg1[%c0_13, %c0_14, %c0_15] : memref<7x7x384xf32, #tpu.memory_space<vmem>>, vector<1x7x384xf32>
    %30 = vector.shape_cast %29 : vector<1x7x384xf32> to vector<7x384xf32>
    %31 = vector.extract_strided_slice %30 {offsets = [0, 0], sizes = [5, 384], strides = [1, 1]} : vector<7x384xf32> to vector<5x384xf32>
    %32 = tpu.concatenate %1, %31 in 0 : vector<2x384xf32>, vector<5x384xf32> -> vector<7x384xf32>
    %33 = arith.mulf %32, %12 : vector<7x384xf32>
    %34 = arith.addf %4, %33 : vector<7x384xf32>
    %35 = arith.mulf %32, %16 : vector<7x384xf32>
    %36 = arith.addf %3, %35 : vector<7x384xf32>
    %37 = arith.mulf %32, %20 : vector<7x384xf32>
    %38 = arith.addf %2, %37 : vector<7x384xf32>
    %c1 = arith.constant 1 : index
    %c0_16 = arith.constant 0 : index
    %c0_17 = arith.constant 0 : index
    %39 = vector.load %arg1[%c1, %c0_16, %c0_17] : memref<7x7x384xf32, #tpu.memory_space<vmem>>, vector<1x7x384xf32>
    %40 = vector.shape_cast %39 : vector<1x7x384xf32> to vector<7x384xf32>
    %41 = vector.extract_strided_slice %40 {offsets = [0, 0], sizes = [5, 384], strides = [1, 1]} : vector<7x384xf32> to vector<5x384xf32>
    %42 = tpu.concatenate %1, %41 in 0 : vector<2x384xf32>, vector<5x384xf32> -> vector<7x384xf32>
    %43 = arith.mulf %42, %12 : vector<7x384xf32>
    %44 = arith.addf %5, %43 : vector<7x384xf32>
    %45 = arith.mulf %42, %16 : vector<7x384xf32>
    %46 = arith.addf %34, %45 : vector<7x384xf32>
    %47 = arith.mulf %42, %20 : vector<7x384xf32>
    %48 = arith.addf %36, %47 : vector<7x384xf32>
    %49 = arith.mulf %42, %24 : vector<7x384xf32>
    %50 = arith.addf %38, %49 : vector<7x384xf32>
    %c2 = arith.constant 2 : index
    %c0_18 = arith.constant 0 : index
    %c0_19 = arith.constant 0 : index
    %51 = vector.load %arg1[%c2, %c0_18, %c0_19] : memref<7x7x384xf32, #tpu.memory_space<vmem>>, vector<1x7x384xf32>
    %52 = vector.shape_cast %51 : vector<1x7x384xf32> to vector<7x384xf32>
    %53 = vector.extract_strided_slice %52 {offsets = [0, 0], sizes = [5, 384], strides = [1, 1]} : vector<7x384xf32> to vector<5x384xf32>
    %54 = tpu.concatenate %1, %53 in 0 : vector<2x384xf32>, vector<5x384xf32> -> vector<7x384xf32>
    %55 = arith.mulf %54, %12 : vector<7x384xf32>
    %56 = arith.addf %6, %55 : vector<7x384xf32>
    %57 = arith.mulf %54, %16 : vector<7x384xf32>
    %58 = arith.addf %44, %57 : vector<7x384xf32>
    %59 = arith.mulf %54, %20 : vector<7x384xf32>
    %60 = arith.addf %46, %59 : vector<7x384xf32>
    %61 = arith.mulf %54, %24 : vector<7x384xf32>
    %62 = arith.addf %48, %61 : vector<7x384xf32>
    %63 = arith.mulf %54, %28 : vector<7x384xf32>
    %64 = arith.addf %50, %63 : vector<7x384xf32>
    %c3 = arith.constant 3 : index
    %c0_20 = arith.constant 0 : index
    %c0_21 = arith.constant 0 : index
    %65 = vector.load %arg1[%c3, %c0_20, %c0_21] : memref<7x7x384xf32, #tpu.memory_space<vmem>>, vector<1x7x384xf32>
    %66 = vector.shape_cast %65 : vector<1x7x384xf32> to vector<7x384xf32>
    %67 = vector.extract_strided_slice %66 {offsets = [0, 0], sizes = [5, 384], strides = [1, 1]} : vector<7x384xf32> to vector<5x384xf32>
    %68 = tpu.concatenate %1, %67 in 0 : vector<2x384xf32>, vector<5x384xf32> -> vector<7x384xf32>
    %69 = arith.mulf %68, %12 : vector<7x384xf32>
    %70 = arith.addf %7, %69 : vector<7x384xf32>
    %71 = arith.mulf %68, %16 : vector<7x384xf32>
    %72 = arith.addf %56, %71 : vector<7x384xf32>
    %73 = arith.mulf %68, %20 : vector<7x384xf32>
    %74 = arith.addf %58, %73 : vector<7x384xf32>
    %75 = arith.mulf %68, %24 : vector<7x384xf32>
    %76 = arith.addf %60, %75 : vector<7x384xf32>
    %77 = arith.mulf %68, %28 : vector<7x384xf32>
    %78 = arith.addf %62, %77 : vector<7x384xf32>
    %c4 = arith.constant 4 : index
    %c0_22 = arith.constant 0 : index
    %c0_23 = arith.constant 0 : index
    %79 = vector.load %arg1[%c4, %c0_22, %c0_23] : memref<7x7x384xf32, #tpu.memory_space<vmem>>, vector<1x7x384xf32>
    %80 = vector.shape_cast %79 : vector<1x7x384xf32> to vector<7x384xf32>
    %81 = vector.extract_strided_slice %80 {offsets = [0, 0], sizes = [5, 384], strides = [1, 1]} : vector<7x384xf32> to vector<5x384xf32>
    %82 = tpu.concatenate %1, %81 in 0 : vector<2x384xf32>, vector<5x384xf32> -> vector<7x384xf32>
    %83 = arith.mulf %82, %12 : vector<7x384xf32>
    %84 = arith.addf %8, %83 : vector<7x384xf32>
    %85 = arith.mulf %82, %16 : vector<7x384xf32>
    %86 = arith.addf %70, %85 : vector<7x384xf32>
    %87 = arith.mulf %82, %20 : vector<7x384xf32>
    %88 = arith.addf %72, %87 : vector<7x384xf32>
    %89 = arith.mulf %82, %24 : vector<7x384xf32>
    %90 = arith.addf %74, %89 : vector<7x384xf32>
    %91 = arith.mulf %82, %28 : vector<7x384xf32>
    %92 = arith.addf %76, %91 : vector<7x384xf32>
    %c5_24 = arith.constant 5 : index
    %c0_25 = arith.constant 0 : index
    %c0_26 = arith.constant 0 : index
    %93 = vector.load %arg1[%c5_24, %c0_25, %c0_26] : memref<7x7x384xf32, #tpu.memory_space<vmem>>, vector<1x7x384xf32>
    %94 = vector.shape_cast %93 : vector<1x7x384xf32> to vector<7x384xf32>
    %95 = vector.extract_strided_slice %94 {offsets = [0, 0], sizes = [5, 384], strides = [1, 1]} : vector<7x384xf32> to vector<5x384xf32>
    %96 = tpu.concatenate %1, %95 in 0 : vector<2x384xf32>, vector<5x384xf32> -> vector<7x384xf32>
    %97 = arith.mulf %96, %16 : vector<7x384xf32>
    %98 = arith.addf %84, %97 : vector<7x384xf32>
    %99 = arith.mulf %96, %20 : vector<7x384xf32>
    %100 = arith.addf %86, %99 : vector<7x384xf32>
    %101 = arith.mulf %96, %24 : vector<7x384xf32>
    %102 = arith.addf %88, %101 : vector<7x384xf32>
    %103 = arith.mulf %96, %28 : vector<7x384xf32>
    %104 = arith.addf %90, %103 : vector<7x384xf32>
    %c6 = arith.constant 6 : index
    %c0_27 = arith.constant 0 : index
    %c0_28 = arith.constant 0 : index
    %105 = vector.load %arg1[%c6, %c0_27, %c0_28] : memref<7x7x384xf32, #tpu.memory_space<vmem>>, vector<1x7x384xf32>
    %106 = vector.shape_cast %105 : vector<1x7x384xf32> to vector<7x384xf32>
    %107 = vector.extract_strided_slice %106 {offsets = [0, 0], sizes = [5, 384], strides = [1, 1]} : vector<7x384xf32> to vector<5x384xf32>
    %108 = tpu.concatenate %1, %107 in 0 : vector<2x384xf32>, vector<5x384xf32> -> vector<7x384xf32>
    %109 = arith.mulf %108, %20 : vector<7x384xf32>
    %110 = arith.addf %98, %109 : vector<7x384xf32>
    %111 = arith.mulf %108, %24 : vector<7x384xf32>
    %112 = arith.addf %100, %111 : vector<7x384xf32>
    %113 = arith.mulf %108, %28 : vector<7x384xf32>
    %114 = arith.addf %102, %113 : vector<7x384xf32>
    %c1_29 = arith.constant 1 : index
    %c0_30 = arith.constant 0 : index
    %115 = vector.load %arg2[%c1_29, %c0_30] : memref<25x384xf32, #tpu.memory_space<vmem>>, vector<1x384xf32>
    %116 = vector.shape_cast %115 : vector<1x384xf32> to vector<384xf32>
    %117 = vector.shape_cast %116 : vector<384xf32> to vector<1x384xf32>
    %118 = vector.broadcast %117 : vector<1x384xf32> to vector<7x384xf32>
    %c6_31 = arith.constant 6 : index
    %c0_32 = arith.constant 0 : index
    %119 = vector.load %arg2[%c6_31, %c0_32] : memref<25x384xf32, #tpu.memory_space<vmem>>, vector<1x384xf32>
    %120 = vector.shape_cast %119 : vector<1x384xf32> to vector<384xf32>
    %121 = vector.shape_cast %120 : vector<384xf32> to vector<1x384xf32>
    %122 = vector.broadcast %121 : vector<1x384xf32> to vector<7x384xf32>
    %c11 = arith.constant 11 : index
    %c0_33 = arith.constant 0 : index
    %123 = vector.load %arg2[%c11, %c0_33] : memref<25x384xf32, #tpu.memory_space<vmem>>, vector<1x384xf32>
    %124 = vector.shape_cast %123 : vector<1x384xf32> to vector<384xf32>
    %125 = vector.shape_cast %124 : vector<384xf32> to vector<1x384xf32>
    %126 = vector.broadcast %125 : vector<1x384xf32> to vector<7x384xf32>
    %c16 = arith.constant 16 : index
    %c0_34 = arith.constant 0 : index
    %127 = vector.load %arg2[%c16, %c0_34] : memref<25x384xf32, #tpu.memory_space<vmem>>, vector<1x384xf32>
    %128 = vector.shape_cast %127 : vector<1x384xf32> to vector<384xf32>
    %129 = vector.shape_cast %128 : vector<384xf32> to vector<1x384xf32>
    %130 = vector.broadcast %129 : vector<1x384xf32> to vector<7x384xf32>
    %c21 = arith.constant 21 : index
    %c0_35 = arith.constant 0 : index
    %131 = vector.load %arg2[%c21, %c0_35] : memref<25x384xf32, #tpu.memory_space<vmem>>, vector<1x384xf32>
    %132 = vector.shape_cast %131 : vector<1x384xf32> to vector<384xf32>
    %133 = vector.shape_cast %132 : vector<384xf32> to vector<1x384xf32>
    %134 = vector.broadcast %133 : vector<1x384xf32> to vector<7x384xf32>
    %c0_36 = arith.constant 0 : index
    %c0_37 = arith.constant 0 : index
    %c0_38 = arith.constant 0 : index
    %135 = vector.load %arg1[%c0_36, %c0_37, %c0_38] : memref<7x7x384xf32, #tpu.memory_space<vmem>>, vector<1x7x384xf32>
    %136 = vector.shape_cast %135 : vector<1x7x384xf32> to vector<7x384xf32>
    %137 = vector.extract_strided_slice %136 {offsets = [0, 0], sizes = [6, 384], strides = [1, 1]} : vector<7x384xf32> to vector<6x384xf32>
    %138 = tpu.concatenate %0, %137 in 0 : vector<1x384xf32>, vector<6x384xf32> -> vector<7x384xf32>
    %139 = arith.mulf %138, %118 : vector<7x384xf32>
    %140 = arith.addf %92, %139 : vector<7x384xf32>
    %141 = arith.mulf %138, %122 : vector<7x384xf32>
    %142 = arith.addf %78, %141 : vector<7x384xf32>
    %143 = arith.mulf %138, %126 : vector<7x384xf32>
    %144 = arith.addf %64, %143 : vector<7x384xf32>
    %c1_39 = arith.constant 1 : index
    %c0_40 = arith.constant 0 : index
    %c0_41 = arith.constant 0 : index
    %145 = vector.load %arg1[%c1_39, %c0_40, %c0_41] : memref<7x7x384xf32, #tpu.memory_space<vmem>>, vector<1x7x384xf32>
    %146 = vector.shape_cast %145 : vector<1x7x384xf32> to vector<7x384xf32>
    %147 = vector.extract_strided_slice %146 {offsets = [0, 0], sizes = [6, 384], strides = [1, 1]} : vector<7x384xf32> to vector<6x384xf32>
    %148 = tpu.concatenate %0, %147 in 0 : vector<1x384xf32>, vector<6x384xf32> -> vector<7x384xf32>
    %149 = arith.mulf %148, %118 : vector<7x384xf32>
    %150 = arith.addf %104, %149 : vector<7x384xf32>
    %151 = arith.mulf %148, %122 : vector<7x384xf32>
    %152 = arith.addf %140, %151 : vector<7x384xf32>
    %153 = arith.mulf %148, %126 : vector<7x384xf32>
    %154 = arith.addf %142, %153 : vector<7x384xf32>
    %155 = arith.mulf %148, %130 : vector<7x384xf32>
    %156 = arith.addf %144, %155 : vector<7x384xf32>
    %c2_42 = arith.constant 2 : index
    %c0_43 = arith.constant 0 : index
    %c0_44 = arith.constant 0 : index
    %157 = vector.load %arg1[%c2_42, %c0_43, %c0_44] : memref<7x7x384xf32, #tpu.memory_space<vmem>>, vector<1x7x384xf32>
    %158 = vector.shape_cast %157 : vector<1x7x384xf32> to vector<7x384xf32>
    %159 = vector.extract_strided_slice %158 {offsets = [0, 0], sizes = [6, 384], strides = [1, 1]} : vector<7x384xf32> to vector<6x384xf32>
    %160 = tpu.concatenate %0, %159 in 0 : vector<1x384xf32>, vector<6x384xf32> -> vector<7x384xf32>
    %161 = arith.mulf %160, %118 : vector<7x384xf32>
    %162 = arith.addf %114, %161 : vector<7x384xf32>
    %163 = arith.mulf %160, %122 : vector<7x384xf32>
    %164 = arith.addf %150, %163 : vector<7x384xf32>
    %165 = arith.mulf %160, %126 : vector<7x384xf32>
    %166 = arith.addf %152, %165 : vector<7x384xf32>
    %167 = arith.mulf %160, %130 : vector<7x384xf32>
    %168 = arith.addf %154, %167 : vector<7x384xf32>
    %169 = arith.mulf %160, %134 : vector<7x384xf32>
    %170 = arith.addf %156, %169 : vector<7x384xf32>
    %c3_45 = arith.constant 3 : index
    %c0_46 = arith.constant 0 : index
    %c0_47 = arith.constant 0 : index
    %171 = vector.load %arg1[%c3_45, %c0_46, %c0_47] : memref<7x7x384xf32, #tpu.memory_space<vmem>>, vector<1x7x384xf32>
    %172 = vector.shape_cast %171 : vector<1x7x384xf32> to vector<7x384xf32>
    %173 = vector.extract_strided_slice %172 {offsets = [0, 0], sizes = [6, 384], strides = [1, 1]} : vector<7x384xf32> to vector<6x384xf32>
    %174 = tpu.concatenate %0, %173 in 0 : vector<1x384xf32>, vector<6x384xf32> -> vector<7x384xf32>
    %175 = arith.mulf %174, %118 : vector<7x384xf32>
    %176 = arith.addf %112, %175 : vector<7x384xf32>
    %177 = arith.mulf %174, %122 : vector<7x384xf32>
    %178 = arith.addf %162, %177 : vector<7x384xf32>
    %179 = arith.mulf %174, %126 : vector<7x384xf32>
    %180 = arith.addf %164, %179 : vector<7x384xf32>
    %181 = arith.mulf %174, %130 : vector<7x384xf32>
    %182 = arith.addf %166, %181 : vector<7x384xf32>
    %183 = arith.mulf %174, %134 : vector<7x384xf32>
    %184 = arith.addf %168, %183 : vector<7x384xf32>
    %c4_48 = arith.constant 4 : index
    %c0_49 = arith.constant 0 : index
    %c0_50 = arith.constant 0 : index
    %185 = vector.load %arg1[%c4_48, %c0_49, %c0_50] : memref<7x7x384xf32, #tpu.memory_space<vmem>>, vector<1x7x384xf32>
    %186 = vector.shape_cast %185 : vector<1x7x384xf32> to vector<7x384xf32>
    %187 = vector.extract_strided_slice %186 {offsets = [0, 0], sizes = [6, 384], strides = [1, 1]} : vector<7x384xf32> to vector<6x384xf32>
    %188 = tpu.concatenate %0, %187 in 0 : vector<1x384xf32>, vector<6x384xf32> -> vector<7x384xf32>
    %189 = arith.mulf %188, %118 : vector<7x384xf32>
    %190 = arith.addf %110, %189 : vector<7x384xf32>
    %191 = arith.mulf %188, %122 : vector<7x384xf32>
    %192 = arith.addf %176, %191 : vector<7x384xf32>
    %193 = arith.mulf %188, %126 : vector<7x384xf32>
    %194 = arith.addf %178, %193 : vector<7x384xf32>
    %195 = arith.mulf %188, %130 : vector<7x384xf32>
    %196 = arith.addf %180, %195 : vector<7x384xf32>
    %197 = arith.mulf %188, %134 : vector<7x384xf32>
    %198 = arith.addf %182, %197 : vector<7x384xf32>
    %c5_51 = arith.constant 5 : index
    %c0_52 = arith.constant 0 : index
    %c0_53 = arith.constant 0 : index
    %199 = vector.load %arg1[%c5_51, %c0_52, %c0_53] : memref<7x7x384xf32, #tpu.memory_space<vmem>>, vector<1x7x384xf32>
    %200 = vector.shape_cast %199 : vector<1x7x384xf32> to vector<7x384xf32>
    %201 = vector.extract_strided_slice %200 {offsets = [0, 0], sizes = [6, 384], strides = [1, 1]} : vector<7x384xf32> to vector<6x384xf32>
    %202 = tpu.concatenate %0, %201 in 0 : vector<1x384xf32>, vector<6x384xf32> -> vector<7x384xf32>
    %203 = arith.mulf %202, %122 : vector<7x384xf32>
    %204 = arith.addf %190, %203 : vector<7x384xf32>
    %205 = arith.mulf %202, %126 : vector<7x384xf32>
    %206 = arith.addf %192, %205 : vector<7x384xf32>
    %207 = arith.mulf %202, %130 : vector<7x384xf32>
    %208 = arith.addf %194, %207 : vector<7x384xf32>
    %209 = arith.mulf %202, %134 : vector<7x384xf32>
    %210 = arith.addf %196, %209 : vector<7x384xf32>
    %c6_54 = arith.constant 6 : index
    %c0_55 = arith.constant 0 : index
    %c0_56 = arith.constant 0 : index
    %211 = vector.load %arg1[%c6_54, %c0_55, %c0_56] : memref<7x7x384xf32, #tpu.memory_space<vmem>>, vector<1x7x384xf32>
    %212 = vector.shape_cast %211 : vector<1x7x384xf32> to vector<7x384xf32>
    %213 = vector.extract_strided_slice %212 {offsets = [0, 0], sizes = [6, 384], strides = [1, 1]} : vector<7x384xf32> to vector<6x384xf32>
    %214 = tpu.concatenate %0, %213 in 0 : vector<1x384xf32>, vector<6x384xf32> -> vector<7x384xf32>
    %215 = arith.mulf %214, %126 : vector<7x384xf32>
    %216 = arith.addf %204, %215 : vector<7x384xf32>
    %217 = arith.mulf %214, %130 : vector<7x384xf32>
    %218 = arith.addf %206, %217 : vector<7x384xf32>
    %219 = arith.mulf %214, %134 : vector<7x384xf32>
    %220 = arith.addf %208, %219 : vector<7x384xf32>
    %c2_57 = arith.constant 2 : index
    %c0_58 = arith.constant 0 : index
    %221 = vector.load %arg2[%c2_57, %c0_58] : memref<25x384xf32, #tpu.memory_space<vmem>>, vector<1x384xf32>
    %222 = vector.shape_cast %221 : vector<1x384xf32> to vector<384xf32>
    %223 = vector.shape_cast %222 : vector<384xf32> to vector<1x384xf32>
    %224 = vector.broadcast %223 : vector<1x384xf32> to vector<7x384xf32>
    %c7 = arith.constant 7 : index
    %c0_59 = arith.constant 0 : index
    %225 = vector.load %arg2[%c7, %c0_59] : memref<25x384xf32, #tpu.memory_space<vmem>>, vector<1x384xf32>
    %226 = vector.shape_cast %225 : vector<1x384xf32> to vector<384xf32>
    %227 = vector.shape_cast %226 : vector<384xf32> to vector<1x384xf32>
    %228 = vector.broadcast %227 : vector<1x384xf32> to vector<7x384xf32>
    %c12 = arith.constant 12 : index
    %c0_60 = arith.constant 0 : index
    %229 = vector.load %arg2[%c12, %c0_60] : memref<25x384xf32, #tpu.memory_space<vmem>>, vector<1x384xf32>
    %230 = vector.shape_cast %229 : vector<1x384xf32> to vector<384xf32>
    %231 = vector.shape_cast %230 : vector<384xf32> to vector<1x384xf32>
    %232 = vector.broadcast %231 : vector<1x384xf32> to vector<7x384xf32>
    %c17 = arith.constant 17 : index
    %c0_61 = arith.constant 0 : index
    %233 = vector.load %arg2[%c17, %c0_61] : memref<25x384xf32, #tpu.memory_space<vmem>>, vector<1x384xf32>
    %234 = vector.shape_cast %233 : vector<1x384xf32> to vector<384xf32>
    %235 = vector.shape_cast %234 : vector<384xf32> to vector<1x384xf32>
    %236 = vector.broadcast %235 : vector<1x384xf32> to vector<7x384xf32>
    %c22 = arith.constant 22 : index
    %c0_62 = arith.constant 0 : index
    %237 = vector.load %arg2[%c22, %c0_62] : memref<25x384xf32, #tpu.memory_space<vmem>>, vector<1x384xf32>
    %238 = vector.shape_cast %237 : vector<1x384xf32> to vector<384xf32>
    %239 = vector.shape_cast %238 : vector<384xf32> to vector<1x384xf32>
    %240 = vector.broadcast %239 : vector<1x384xf32> to vector<7x384xf32>
    %c0_63 = arith.constant 0 : index
    %c0_64 = arith.constant 0 : index
    %c0_65 = arith.constant 0 : index
    %241 = vector.load %arg1[%c0_63, %c0_64, %c0_65] : memref<7x7x384xf32, #tpu.memory_space<vmem>>, vector<1x7x384xf32>
    %242 = vector.shape_cast %241 : vector<1x7x384xf32> to vector<7x384xf32>
    %243 = arith.mulf %242, %224 : vector<7x384xf32>
    %244 = arith.addf %198, %243 : vector<7x384xf32>
    %245 = arith.mulf %242, %228 : vector<7x384xf32>
    %246 = arith.addf %184, %245 : vector<7x384xf32>
    %247 = arith.mulf %242, %232 : vector<7x384xf32>
    %248 = arith.addf %170, %247 : vector<7x384xf32>
    %c1_66 = arith.constant 1 : index
    %c0_67 = arith.constant 0 : index
    %c0_68 = arith.constant 0 : index
    %249 = vector.load %arg1[%c1_66, %c0_67, %c0_68] : memref<7x7x384xf32, #tpu.memory_space<vmem>>, vector<1x7x384xf32>
    %250 = vector.shape_cast %249 : vector<1x7x384xf32> to vector<7x384xf32>
    %251 = arith.mulf %250, %224 : vector<7x384xf32>
    %252 = arith.addf %210, %251 : vector<7x384xf32>
    %253 = arith.mulf %250, %228 : vector<7x384xf32>
    %254 = arith.addf %244, %253 : vector<7x384xf32>
    %255 = arith.mulf %250, %232 : vector<7x384xf32>
    %256 = arith.addf %246, %255 : vector<7x384xf32>
    %257 = arith.mulf %250, %236 : vector<7x384xf32>
    %258 = arith.addf %248, %257 : vector<7x384xf32>
    %c2_69 = arith.constant 2 : index
    %c0_70 = arith.constant 0 : index
    %c0_71 = arith.constant 0 : index
    %259 = vector.load %arg1[%c2_69, %c0_70, %c0_71] : memref<7x7x384xf32, #tpu.memory_space<vmem>>, vector<1x7x384xf32>
    %260 = vector.shape_cast %259 : vector<1x7x384xf32> to vector<7x384xf32>
    %261 = arith.mulf %260, %224 : vector<7x384xf32>
    %262 = arith.addf %220, %261 : vector<7x384xf32>
    %263 = arith.mulf %260, %228 : vector<7x384xf32>
    %264 = arith.addf %252, %263 : vector<7x384xf32>
    %265 = arith.mulf %260, %232 : vector<7x384xf32>
    %266 = arith.addf %254, %265 : vector<7x384xf32>
    %267 = arith.mulf %260, %236 : vector<7x384xf32>
    %268 = arith.addf %256, %267 : vector<7x384xf32>
    %269 = arith.mulf %260, %240 : vector<7x384xf32>
    %270 = arith.addf %258, %269 : vector<7x384xf32>
    %c3_72 = arith.constant 3 : index
    %c0_73 = arith.constant 0 : index
    %c0_74 = arith.constant 0 : index
    %271 = vector.load %arg1[%c3_72, %c0_73, %c0_74] : memref<7x7x384xf32, #tpu.memory_space<vmem>>, vector<1x7x384xf32>
    %272 = vector.shape_cast %271 : vector<1x7x384xf32> to vector<7x384xf32>
    %273 = arith.mulf %272, %224 : vector<7x384xf32>
    %274 = arith.addf %218, %273 : vector<7x384xf32>
    %275 = arith.mulf %272, %228 : vector<7x384xf32>
    %276 = arith.addf %262, %275 : vector<7x384xf32>
    %277 = arith.mulf %272, %232 : vector<7x384xf32>
    %278 = arith.addf %264, %277 : vector<7x384xf32>
    %279 = arith.mulf %272, %236 : vector<7x384xf32>
    %280 = arith.addf %266, %279 : vector<7x384xf32>
    %281 = arith.mulf %272, %240 : vector<7x384xf32>
    %282 = arith.addf %268, %281 : vector<7x384xf32>
    %c4_75 = arith.constant 4 : index
    %c0_76 = arith.constant 0 : index
    %c0_77 = arith.constant 0 : index
    %283 = vector.load %arg1[%c4_75, %c0_76, %c0_77] : memref<7x7x384xf32, #tpu.memory_space<vmem>>, vector<1x7x384xf32>
    %284 = vector.shape_cast %283 : vector<1x7x384xf32> to vector<7x384xf32>
    %285 = arith.mulf %284, %224 : vector<7x384xf32>
    %286 = arith.addf %216, %285 : vector<7x384xf32>
    %287 = arith.mulf %284, %228 : vector<7x384xf32>
    %288 = arith.addf %274, %287 : vector<7x384xf32>
    %289 = arith.mulf %284, %232 : vector<7x384xf32>
    %290 = arith.addf %276, %289 : vector<7x384xf32>
    %291 = arith.mulf %284, %236 : vector<7x384xf32>
    %292 = arith.addf %278, %291 : vector<7x384xf32>
    %293 = arith.mulf %284, %240 : vector<7x384xf32>
    %294 = arith.addf %280, %293 : vector<7x384xf32>
    %c5_78 = arith.constant 5 : index
    %c0_79 = arith.constant 0 : index
    %c0_80 = arith.constant 0 : index
    %295 = vector.load %arg1[%c5_78, %c0_79, %c0_80] : memref<7x7x384xf32, #tpu.memory_space<vmem>>, vector<1x7x384xf32>
    %296 = vector.shape_cast %295 : vector<1x7x384xf32> to vector<7x384xf32>
    %297 = arith.mulf %296, %228 : vector<7x384xf32>
    %298 = arith.addf %286, %297 : vector<7x384xf32>
    %299 = arith.mulf %296, %232 : vector<7x384xf32>
    %300 = arith.addf %288, %299 : vector<7x384xf32>
    %301 = arith.mulf %296, %236 : vector<7x384xf32>
    %302 = arith.addf %290, %301 : vector<7x384xf32>
    %303 = arith.mulf %296, %240 : vector<7x384xf32>
    %304 = arith.addf %292, %303 : vector<7x384xf32>
    %c6_81 = arith.constant 6 : index
    %c0_82 = arith.constant 0 : index
    %c0_83 = arith.constant 0 : index
    %305 = vector.load %arg1[%c6_81, %c0_82, %c0_83] : memref<7x7x384xf32, #tpu.memory_space<vmem>>, vector<1x7x384xf32>
    %306 = vector.shape_cast %305 : vector<1x7x384xf32> to vector<7x384xf32>
    %307 = arith.mulf %306, %232 : vector<7x384xf32>
    %308 = arith.addf %298, %307 : vector<7x384xf32>
    %309 = arith.mulf %306, %236 : vector<7x384xf32>
    %310 = arith.addf %300, %309 : vector<7x384xf32>
    %311 = arith.mulf %306, %240 : vector<7x384xf32>
    %312 = arith.addf %302, %311 : vector<7x384xf32>
    %c3_84 = arith.constant 3 : index
    %c0_85 = arith.constant 0 : index
    %313 = vector.load %arg2[%c3_84, %c0_85] : memref<25x384xf32, #tpu.memory_space<vmem>>, vector<1x384xf32>
    %314 = vector.shape_cast %313 : vector<1x384xf32> to vector<384xf32>
    %315 = vector.shape_cast %314 : vector<384xf32> to vector<1x384xf32>
    %316 = vector.broadcast %315 : vector<1x384xf32> to vector<7x384xf32>
    %c8 = arith.constant 8 : index
    %c0_86 = arith.constant 0 : index
    %317 = vector.load %arg2[%c8, %c0_86] : memref<25x384xf32, #tpu.memory_space<vmem>>, vector<1x384xf32>
    %318 = vector.shape_cast %317 : vector<1x384xf32> to vector<384xf32>
    %319 = vector.shape_cast %318 : vector<384xf32> to vector<1x384xf32>
    %320 = vector.broadcast %319 : vector<1x384xf32> to vector<7x384xf32>
    %c13 = arith.constant 13 : index
    %c0_87 = arith.constant 0 : index
    %321 = vector.load %arg2[%c13, %c0_87] : memref<25x384xf32, #tpu.memory_space<vmem>>, vector<1x384xf32>
    %322 = vector.shape_cast %321 : vector<1x384xf32> to vector<384xf32>
    %323 = vector.shape_cast %322 : vector<384xf32> to vector<1x384xf32>
    %324 = vector.broadcast %323 : vector<1x384xf32> to vector<7x384xf32>
    %c18 = arith.constant 18 : index
    %c0_88 = arith.constant 0 : index
    %325 = vector.load %arg2[%c18, %c0_88] : memref<25x384xf32, #tpu.memory_space<vmem>>, vector<1x384xf32>
    %326 = vector.shape_cast %325 : vector<1x384xf32> to vector<384xf32>
    %327 = vector.shape_cast %326 : vector<384xf32> to vector<1x384xf32>
    %328 = vector.broadcast %327 : vector<1x384xf32> to vector<7x384xf32>
    %c23 = arith.constant 23 : index
    %c0_89 = arith.constant 0 : index
    %329 = vector.load %arg2[%c23, %c0_89] : memref<25x384xf32, #tpu.memory_space<vmem>>, vector<1x384xf32>
    %330 = vector.shape_cast %329 : vector<1x384xf32> to vector<384xf32>
    %331 = vector.shape_cast %330 : vector<384xf32> to vector<1x384xf32>
    %332 = vector.broadcast %331 : vector<1x384xf32> to vector<7x384xf32>
    %c0_90 = arith.constant 0 : index
    %c0_91 = arith.constant 0 : index
    %c0_92 = arith.constant 0 : index
    %333 = vector.load %arg1[%c0_90, %c0_91, %c0_92] : memref<7x7x384xf32, #tpu.memory_space<vmem>>, vector<1x7x384xf32>
    %334 = vector.shape_cast %333 : vector<1x7x384xf32> to vector<7x384xf32>
    %335 = vector.extract_strided_slice %334 {offsets = [1, 0], sizes = [6, 384], strides = [1, 1]} : vector<7x384xf32> to vector<6x384xf32>
    %336 = tpu.concatenate %335, %0 in 0 : vector<6x384xf32>, vector<1x384xf32> -> vector<7x384xf32>
    %337 = arith.mulf %336, %316 : vector<7x384xf32>
    %338 = arith.addf %294, %337 : vector<7x384xf32>
    %339 = arith.mulf %336, %320 : vector<7x384xf32>
    %340 = arith.addf %282, %339 : vector<7x384xf32>
    %341 = arith.mulf %336, %324 : vector<7x384xf32>
    %342 = arith.addf %270, %341 : vector<7x384xf32>
    %c1_93 = arith.constant 1 : index
    %c0_94 = arith.constant 0 : index
    %c0_95 = arith.constant 0 : index
    %343 = vector.load %arg1[%c1_93, %c0_94, %c0_95] : memref<7x7x384xf32, #tpu.memory_space<vmem>>, vector<1x7x384xf32>
    %344 = vector.shape_cast %343 : vector<1x7x384xf32> to vector<7x384xf32>
    %345 = vector.extract_strided_slice %344 {offsets = [1, 0], sizes = [6, 384], strides = [1, 1]} : vector<7x384xf32> to vector<6x384xf32>
    %346 = tpu.concatenate %345, %0 in 0 : vector<6x384xf32>, vector<1x384xf32> -> vector<7x384xf32>
    %347 = arith.mulf %346, %316 : vector<7x384xf32>
    %348 = arith.addf %304, %347 : vector<7x384xf32>
    %349 = arith.mulf %346, %320 : vector<7x384xf32>
    %350 = arith.addf %338, %349 : vector<7x384xf32>
    %351 = arith.mulf %346, %324 : vector<7x384xf32>
    %352 = arith.addf %340, %351 : vector<7x384xf32>
    %353 = arith.mulf %346, %328 : vector<7x384xf32>
    %354 = arith.addf %342, %353 : vector<7x384xf32>
    %c2_96 = arith.constant 2 : index
    %c0_97 = arith.constant 0 : index
    %c0_98 = arith.constant 0 : index
    %355 = vector.load %arg1[%c2_96, %c0_97, %c0_98] : memref<7x7x384xf32, #tpu.memory_space<vmem>>, vector<1x7x384xf32>
    %356 = vector.shape_cast %355 : vector<1x7x384xf32> to vector<7x384xf32>
    %357 = vector.extract_strided_slice %356 {offsets = [1, 0], sizes = [6, 384], strides = [1, 1]} : vector<7x384xf32> to vector<6x384xf32>
    %358 = tpu.concatenate %357, %0 in 0 : vector<6x384xf32>, vector<1x384xf32> -> vector<7x384xf32>
    %359 = arith.mulf %358, %316 : vector<7x384xf32>
    %360 = arith.addf %312, %359 : vector<7x384xf32>
    %361 = arith.mulf %358, %320 : vector<7x384xf32>
    %362 = arith.addf %348, %361 : vector<7x384xf32>
    %363 = arith.mulf %358, %324 : vector<7x384xf32>
    %364 = arith.addf %350, %363 : vector<7x384xf32>
    %365 = arith.mulf %358, %328 : vector<7x384xf32>
    %366 = arith.addf %352, %365 : vector<7x384xf32>
    %367 = arith.mulf %358, %332 : vector<7x384xf32>
    %368 = arith.addf %354, %367 : vector<7x384xf32>
    %c3_99 = arith.constant 3 : index
    %c0_100 = arith.constant 0 : index
    %c0_101 = arith.constant 0 : index
    %369 = vector.load %arg1[%c3_99, %c0_100, %c0_101] : memref<7x7x384xf32, #tpu.memory_space<vmem>>, vector<1x7x384xf32>
    %370 = vector.shape_cast %369 : vector<1x7x384xf32> to vector<7x384xf32>
    %371 = vector.extract_strided_slice %370 {offsets = [1, 0], sizes = [6, 384], strides = [1, 1]} : vector<7x384xf32> to vector<6x384xf32>
    %372 = tpu.concatenate %371, %0 in 0 : vector<6x384xf32>, vector<1x384xf32> -> vector<7x384xf32>
    %373 = arith.mulf %372, %316 : vector<7x384xf32>
    %374 = arith.addf %310, %373 : vector<7x384xf32>
    %375 = arith.mulf %372, %320 : vector<7x384xf32>
    %376 = arith.addf %360, %375 : vector<7x384xf32>
    %377 = arith.mulf %372, %324 : vector<7x384xf32>
    %378 = arith.addf %362, %377 : vector<7x384xf32>
    %379 = arith.mulf %372, %328 : vector<7x384xf32>
    %380 = arith.addf %364, %379 : vector<7x384xf32>
    %381 = arith.mulf %372, %332 : vector<7x384xf32>
    %382 = arith.addf %366, %381 : vector<7x384xf32>
    %c4_102 = arith.constant 4 : index
    %c0_103 = arith.constant 0 : index
    %c0_104 = arith.constant 0 : index
    %383 = vector.load %arg1[%c4_102, %c0_103, %c0_104] : memref<7x7x384xf32, #tpu.memory_space<vmem>>, vector<1x7x384xf32>
    %384 = vector.shape_cast %383 : vector<1x7x384xf32> to vector<7x384xf32>
    %385 = vector.extract_strided_slice %384 {offsets = [1, 0], sizes = [6, 384], strides = [1, 1]} : vector<7x384xf32> to vector<6x384xf32>
    %386 = tpu.concatenate %385, %0 in 0 : vector<6x384xf32>, vector<1x384xf32> -> vector<7x384xf32>
    %387 = arith.mulf %386, %316 : vector<7x384xf32>
    %388 = arith.addf %308, %387 : vector<7x384xf32>
    %389 = arith.mulf %386, %320 : vector<7x384xf32>
    %390 = arith.addf %374, %389 : vector<7x384xf32>
    %391 = arith.mulf %386, %324 : vector<7x384xf32>
    %392 = arith.addf %376, %391 : vector<7x384xf32>
    %393 = arith.mulf %386, %328 : vector<7x384xf32>
    %394 = arith.addf %378, %393 : vector<7x384xf32>
    %395 = arith.mulf %386, %332 : vector<7x384xf32>
    %396 = arith.addf %380, %395 : vector<7x384xf32>
    %c5_105 = arith.constant 5 : index
    %c0_106 = arith.constant 0 : index
    %c0_107 = arith.constant 0 : index
    %397 = vector.load %arg1[%c5_105, %c0_106, %c0_107] : memref<7x7x384xf32, #tpu.memory_space<vmem>>, vector<1x7x384xf32>
    %398 = vector.shape_cast %397 : vector<1x7x384xf32> to vector<7x384xf32>
    %399 = vector.extract_strided_slice %398 {offsets = [1, 0], sizes = [6, 384], strides = [1, 1]} : vector<7x384xf32> to vector<6x384xf32>
    %400 = tpu.concatenate %399, %0 in 0 : vector<6x384xf32>, vector<1x384xf32> -> vector<7x384xf32>
    %401 = arith.mulf %400, %320 : vector<7x384xf32>
    %402 = arith.addf %388, %401 : vector<7x384xf32>
    %403 = arith.mulf %400, %324 : vector<7x384xf32>
    %404 = arith.addf %390, %403 : vector<7x384xf32>
    %405 = arith.mulf %400, %328 : vector<7x384xf32>
    %406 = arith.addf %392, %405 : vector<7x384xf32>
    %407 = arith.mulf %400, %332 : vector<7x384xf32>
    %408 = arith.addf %394, %407 : vector<7x384xf32>
    %c6_108 = arith.constant 6 : index
    %c0_109 = arith.constant 0 : index
    %c0_110 = arith.constant 0 : index
    %409 = vector.load %arg1[%c6_108, %c0_109, %c0_110] : memref<7x7x384xf32, #tpu.memory_space<vmem>>, vector<1x7x384xf32>
    %410 = vector.shape_cast %409 : vector<1x7x384xf32> to vector<7x384xf32>
    %411 = vector.extract_strided_slice %410 {offsets = [1, 0], sizes = [6, 384], strides = [1, 1]} : vector<7x384xf32> to vector<6x384xf32>
    %412 = tpu.concatenate %411, %0 in 0 : vector<6x384xf32>, vector<1x384xf32> -> vector<7x384xf32>
    %413 = arith.mulf %412, %324 : vector<7x384xf32>
    %414 = arith.addf %402, %413 : vector<7x384xf32>
    %415 = arith.mulf %412, %328 : vector<7x384xf32>
    %416 = arith.addf %404, %415 : vector<7x384xf32>
    %417 = arith.mulf %412, %332 : vector<7x384xf32>
    %418 = arith.addf %406, %417 : vector<7x384xf32>
    %c4_111 = arith.constant 4 : index
    %c0_112 = arith.constant 0 : index
    %419 = vector.load %arg2[%c4_111, %c0_112] : memref<25x384xf32, #tpu.memory_space<vmem>>, vector<1x384xf32>
    %420 = vector.shape_cast %419 : vector<1x384xf32> to vector<384xf32>
    %421 = vector.shape_cast %420 : vector<384xf32> to vector<1x384xf32>
    %422 = vector.broadcast %421 : vector<1x384xf32> to vector<7x384xf32>
    %c9 = arith.constant 9 : index
    %c0_113 = arith.constant 0 : index
    %423 = vector.load %arg2[%c9, %c0_113] : memref<25x384xf32, #tpu.memory_space<vmem>>, vector<1x384xf32>
    %424 = vector.shape_cast %423 : vector<1x384xf32> to vector<384xf32>
    %425 = vector.shape_cast %424 : vector<384xf32> to vector<1x384xf32>
    %426 = vector.broadcast %425 : vector<1x384xf32> to vector<7x384xf32>
    %c14 = arith.constant 14 : index
    %c0_114 = arith.constant 0 : index
    %427 = vector.load %arg2[%c14, %c0_114] : memref<25x384xf32, #tpu.memory_space<vmem>>, vector<1x384xf32>
    %428 = vector.shape_cast %427 : vector<1x384xf32> to vector<384xf32>
    %429 = vector.shape_cast %428 : vector<384xf32> to vector<1x384xf32>
    %430 = vector.broadcast %429 : vector<1x384xf32> to vector<7x384xf32>
    %c19 = arith.constant 19 : index
    %c0_115 = arith.constant 0 : index
    %431 = vector.load %arg2[%c19, %c0_115] : memref<25x384xf32, #tpu.memory_space<vmem>>, vector<1x384xf32>
    %432 = vector.shape_cast %431 : vector<1x384xf32> to vector<384xf32>
    %433 = vector.shape_cast %432 : vector<384xf32> to vector<1x384xf32>
    %434 = vector.broadcast %433 : vector<1x384xf32> to vector<7x384xf32>
    %c24 = arith.constant 24 : index
    %c0_116 = arith.constant 0 : index
    %435 = vector.load %arg2[%c24, %c0_116] : memref<25x384xf32, #tpu.memory_space<vmem>>, vector<1x384xf32>
    %436 = vector.shape_cast %435 : vector<1x384xf32> to vector<384xf32>
    %437 = vector.shape_cast %436 : vector<384xf32> to vector<1x384xf32>
    %438 = vector.broadcast %437 : vector<1x384xf32> to vector<7x384xf32>
    %c0_117 = arith.constant 0 : index
    %c0_118 = arith.constant 0 : index
    %c0_119 = arith.constant 0 : index
    %439 = vector.load %arg1[%c0_117, %c0_118, %c0_119] : memref<7x7x384xf32, #tpu.memory_space<vmem>>, vector<1x7x384xf32>
    %440 = vector.shape_cast %439 : vector<1x7x384xf32> to vector<7x384xf32>
    %441 = vector.extract_strided_slice %440 {offsets = [2, 0], sizes = [5, 384], strides = [1, 1]} : vector<7x384xf32> to vector<5x384xf32>
    %442 = tpu.concatenate %441, %1 in 0 : vector<5x384xf32>, vector<2x384xf32> -> vector<7x384xf32>
    %443 = arith.mulf %442, %422 : vector<7x384xf32>
    %444 = arith.addf %396, %443 : vector<7x384xf32>
    %445 = arith.mulf %442, %426 : vector<7x384xf32>
    %446 = arith.addf %382, %445 : vector<7x384xf32>
    %447 = arith.mulf %442, %430 : vector<7x384xf32>
    %448 = arith.addf %368, %447 : vector<7x384xf32>
    %c1_120 = arith.constant 1 : index
    %c0_121 = arith.constant 0 : index
    %c0_122 = arith.constant 0 : index
    %449 = vector.load %arg1[%c1_120, %c0_121, %c0_122] : memref<7x7x384xf32, #tpu.memory_space<vmem>>, vector<1x7x384xf32>
    %450 = vector.shape_cast %449 : vector<1x7x384xf32> to vector<7x384xf32>
    %451 = vector.extract_strided_slice %450 {offsets = [2, 0], sizes = [5, 384], strides = [1, 1]} : vector<7x384xf32> to vector<5x384xf32>
    %452 = tpu.concatenate %451, %1 in 0 : vector<5x384xf32>, vector<2x384xf32> -> vector<7x384xf32>
    %453 = arith.mulf %452, %422 : vector<7x384xf32>
    %454 = arith.addf %408, %453 : vector<7x384xf32>
    %455 = arith.mulf %452, %426 : vector<7x384xf32>
    %456 = arith.addf %444, %455 : vector<7x384xf32>
    %457 = arith.mulf %452, %430 : vector<7x384xf32>
    %458 = arith.addf %446, %457 : vector<7x384xf32>
    %459 = arith.mulf %452, %434 : vector<7x384xf32>
    %460 = arith.addf %448, %459 : vector<7x384xf32>
    %c2_123 = arith.constant 2 : index
    %c0_124 = arith.constant 0 : index
    %c0_125 = arith.constant 0 : index
    %461 = vector.load %arg1[%c2_123, %c0_124, %c0_125] : memref<7x7x384xf32, #tpu.memory_space<vmem>>, vector<1x7x384xf32>
    %462 = vector.shape_cast %461 : vector<1x7x384xf32> to vector<7x384xf32>
    %463 = vector.extract_strided_slice %462 {offsets = [2, 0], sizes = [5, 384], strides = [1, 1]} : vector<7x384xf32> to vector<5x384xf32>
    %464 = tpu.concatenate %463, %1 in 0 : vector<5x384xf32>, vector<2x384xf32> -> vector<7x384xf32>
    %465 = arith.mulf %464, %422 : vector<7x384xf32>
    %466 = arith.addf %418, %465 : vector<7x384xf32>
    %467 = arith.mulf %464, %426 : vector<7x384xf32>
    %468 = arith.addf %454, %467 : vector<7x384xf32>
    %469 = arith.mulf %464, %430 : vector<7x384xf32>
    %470 = arith.addf %456, %469 : vector<7x384xf32>
    %471 = arith.mulf %464, %434 : vector<7x384xf32>
    %472 = arith.addf %458, %471 : vector<7x384xf32>
    %473 = arith.mulf %464, %438 : vector<7x384xf32>
    %474 = arith.addf %460, %473 : vector<7x384xf32>
    %c3_126 = arith.constant 3 : index
    %c0_127 = arith.constant 0 : index
    %c0_128 = arith.constant 0 : index
    %475 = vector.load %arg1[%c3_126, %c0_127, %c0_128] : memref<7x7x384xf32, #tpu.memory_space<vmem>>, vector<1x7x384xf32>
    %476 = vector.shape_cast %475 : vector<1x7x384xf32> to vector<7x384xf32>
    %477 = vector.extract_strided_slice %476 {offsets = [2, 0], sizes = [5, 384], strides = [1, 1]} : vector<7x384xf32> to vector<5x384xf32>
    %478 = tpu.concatenate %477, %1 in 0 : vector<5x384xf32>, vector<2x384xf32> -> vector<7x384xf32>
    %479 = arith.mulf %478, %422 : vector<7x384xf32>
    %480 = arith.addf %416, %479 : vector<7x384xf32>
    %481 = arith.mulf %478, %426 : vector<7x384xf32>
    %482 = arith.addf %466, %481 : vector<7x384xf32>
    %483 = arith.mulf %478, %430 : vector<7x384xf32>
    %484 = arith.addf %468, %483 : vector<7x384xf32>
    %485 = arith.mulf %478, %434 : vector<7x384xf32>
    %486 = arith.addf %470, %485 : vector<7x384xf32>
    %487 = arith.mulf %478, %438 : vector<7x384xf32>
    %488 = arith.addf %472, %487 : vector<7x384xf32>
    %c4_129 = arith.constant 4 : index
    %c0_130 = arith.constant 0 : index
    %c0_131 = arith.constant 0 : index
    %489 = vector.load %arg1[%c4_129, %c0_130, %c0_131] : memref<7x7x384xf32, #tpu.memory_space<vmem>>, vector<1x7x384xf32>
    %490 = vector.shape_cast %489 : vector<1x7x384xf32> to vector<7x384xf32>
    %491 = vector.extract_strided_slice %490 {offsets = [2, 0], sizes = [5, 384], strides = [1, 1]} : vector<7x384xf32> to vector<5x384xf32>
    %492 = tpu.concatenate %491, %1 in 0 : vector<5x384xf32>, vector<2x384xf32> -> vector<7x384xf32>
    %493 = arith.mulf %492, %422 : vector<7x384xf32>
    %494 = arith.addf %414, %493 : vector<7x384xf32>
    %495 = arith.mulf %492, %426 : vector<7x384xf32>
    %496 = arith.addf %480, %495 : vector<7x384xf32>
    %497 = arith.mulf %492, %430 : vector<7x384xf32>
    %498 = arith.addf %482, %497 : vector<7x384xf32>
    %499 = arith.mulf %492, %434 : vector<7x384xf32>
    %500 = arith.addf %484, %499 : vector<7x384xf32>
    %501 = arith.mulf %492, %438 : vector<7x384xf32>
    %502 = arith.addf %486, %501 : vector<7x384xf32>
    %c5_132 = arith.constant 5 : index
    %c0_133 = arith.constant 0 : index
    %c0_134 = arith.constant 0 : index
    %503 = vector.load %arg1[%c5_132, %c0_133, %c0_134] : memref<7x7x384xf32, #tpu.memory_space<vmem>>, vector<1x7x384xf32>
    %504 = vector.shape_cast %503 : vector<1x7x384xf32> to vector<7x384xf32>
    %505 = vector.extract_strided_slice %504 {offsets = [2, 0], sizes = [5, 384], strides = [1, 1]} : vector<7x384xf32> to vector<5x384xf32>
    %506 = tpu.concatenate %505, %1 in 0 : vector<5x384xf32>, vector<2x384xf32> -> vector<7x384xf32>
    %507 = arith.mulf %506, %426 : vector<7x384xf32>
    %508 = arith.addf %494, %507 : vector<7x384xf32>
    %509 = arith.mulf %506, %430 : vector<7x384xf32>
    %510 = arith.addf %496, %509 : vector<7x384xf32>
    %511 = arith.mulf %506, %434 : vector<7x384xf32>
    %512 = arith.addf %498, %511 : vector<7x384xf32>
    %513 = arith.mulf %506, %438 : vector<7x384xf32>
    %514 = arith.addf %500, %513 : vector<7x384xf32>
    %c6_135 = arith.constant 6 : index
    %c0_136 = arith.constant 0 : index
    %c0_137 = arith.constant 0 : index
    %515 = vector.load %arg1[%c6_135, %c0_136, %c0_137] : memref<7x7x384xf32, #tpu.memory_space<vmem>>, vector<1x7x384xf32>
    %516 = vector.shape_cast %515 : vector<1x7x384xf32> to vector<7x384xf32>
    %517 = vector.extract_strided_slice %516 {offsets = [2, 0], sizes = [5, 384], strides = [1, 1]} : vector<7x384xf32> to vector<5x384xf32>
    %518 = tpu.concatenate %517, %1 in 0 : vector<5x384xf32>, vector<2x384xf32> -> vector<7x384xf32>
    %519 = arith.mulf %518, %430 : vector<7x384xf32>
    %520 = arith.addf %508, %519 : vector<7x384xf32>
    %521 = arith.mulf %518, %434 : vector<7x384xf32>
    %522 = arith.addf %510, %521 : vector<7x384xf32>
    %523 = arith.mulf %518, %438 : vector<7x384xf32>
    %524 = arith.addf %512, %523 : vector<7x384xf32>
    %525 = arith.mulf %474, %474 : vector<7x384xf32>
    %526 = arith.addf %474, %488 : vector<7x384xf32>
    %527 = arith.mulf %488, %488 : vector<7x384xf32>
    %528 = arith.addf %525, %527 : vector<7x384xf32>
    %529 = arith.addf %526, %502 : vector<7x384xf32>
    %530 = arith.mulf %502, %502 : vector<7x384xf32>
    %531 = arith.addf %528, %530 : vector<7x384xf32>
    %532 = arith.addf %529, %514 : vector<7x384xf32>
    %533 = arith.mulf %514, %514 : vector<7x384xf32>
    %534 = arith.addf %531, %533 : vector<7x384xf32>
    %535 = arith.addf %532, %524 : vector<7x384xf32>
    %536 = arith.mulf %524, %524 : vector<7x384xf32>
    %537 = arith.addf %534, %536 : vector<7x384xf32>
    %538 = arith.addf %535, %522 : vector<7x384xf32>
    %539 = arith.mulf %522, %522 : vector<7x384xf32>
    %540 = arith.addf %537, %539 : vector<7x384xf32>
    %541 = arith.addf %538, %520 : vector<7x384xf32>
    %542 = arith.mulf %520, %520 : vector<7x384xf32>
    %543 = arith.addf %540, %542 : vector<7x384xf32>
    %cst_138 = arith.constant dense<0.000000e+00> : vector<384xf32>
    %544 = vector.multi_reduction <add>, %541, %cst_138 [0] : vector<7x384xf32> to vector<384xf32>
    %545 = vector.shape_cast %544 : vector<384xf32> to vector<1x384xf32>
    %cst_139 = arith.constant dense<0.000000e+00> : vector<384xf32>
    %546 = vector.multi_reduction <add>, %543, %cst_139 [0] : vector<7x384xf32> to vector<384xf32>
    %547 = vector.shape_cast %546 : vector<384xf32> to vector<1x384xf32>
    %cst_140 = arith.constant 0.0204081628 : f32
    %548 = vector.broadcast %cst_140 : f32 to vector<1x384xf32>
    %549 = arith.mulf %545, %548 : vector<1x384xf32>
    %cst_141 = arith.constant 0.0204081628 : f32
    %550 = vector.broadcast %cst_141 : f32 to vector<1x384xf32>
    %551 = arith.mulf %547, %550 : vector<1x384xf32>
    %552 = arith.mulf %549, %549 : vector<1x384xf32>
    %553 = arith.subf %551, %552 : vector<1x384xf32>
    %cst_142 = arith.constant 1.000000e-03 : f32
    %554 = vector.broadcast %cst_142 : f32 to vector<1x384xf32>
    %555 = arith.addf %553, %554 : vector<1x384xf32>
    %556 = math.rsqrt %555 : vector<1x384xf32>
    %c0_143 = arith.constant 0 : index
    %c0_144 = arith.constant 0 : index
    %557 = vector.load %arg3[%c0_143, %c0_144] : memref<1x384xf32, #tpu.memory_space<vmem>>, vector<1x384xf32>
    %558 = arith.mulf %556, %557 : vector<1x384xf32>
    %c0_145 = arith.constant 0 : index
    %c0_146 = arith.constant 0 : index
    %559 = vector.load %arg4[%c0_145, %c0_146] : memref<1x384xf32, #tpu.memory_space<vmem>>, vector<1x384xf32>
    %560 = arith.mulf %549, %558 : vector<1x384xf32>
    %561 = arith.subf %559, %560 : vector<1x384xf32>
    %562 = vector.shape_cast %558 : vector<1x384xf32> to vector<1x384xf32>
    %563 = vector.broadcast %562 : vector<1x384xf32> to vector<7x384xf32>
    %564 = vector.shape_cast %561 : vector<1x384xf32> to vector<1x384xf32>
    %565 = vector.broadcast %564 : vector<1x384xf32> to vector<7x384xf32>
    %566 = arith.mulf %474, %563 : vector<7x384xf32>
    %567 = arith.addf %566, %565 : vector<7x384xf32>
    %c0_147 = arith.constant 0 : index
    %c0_148 = arith.constant 0 : index
    %c0_149 = arith.constant 0 : index
    %568 = vector.load %arg5[%c0_147, %c0_148, %c0_149] : memref<7x7x384xf32, #tpu.memory_space<vmem>>, vector<1x7x384xf32>
    %569 = vector.shape_cast %568 : vector<1x7x384xf32> to vector<7x384xf32>
    %570 = vector.shape_cast %567 : vector<7x384xf32> to vector<1x7x384xf32>
    tpu.vector_store %arg5[%c0_147, %c0_148, %c0_149], %570 {strides = array<i32>} : memref<7x7x384xf32, #tpu.memory_space<vmem>>, vector<1x7x384xf32>,
    %571 = arith.mulf %488, %563 : vector<7x384xf32>
    %572 = arith.addf %571, %565 : vector<7x384xf32>
    %c1_150 = arith.constant 1 : index
    %c0_151 = arith.constant 0 : index
    %c0_152 = arith.constant 0 : index
    %573 = vector.load %arg5[%c1_150, %c0_151, %c0_152] : memref<7x7x384xf32, #tpu.memory_space<vmem>>, vector<1x7x384xf32>
    %574 = vector.shape_cast %573 : vector<1x7x384xf32> to vector<7x384xf32>
    %575 = vector.shape_cast %572 : vector<7x384xf32> to vector<1x7x384xf32>
    tpu.vector_store %arg5[%c1_150, %c0_151, %c0_152], %575 {strides = array<i32>} : memref<7x7x384xf32, #tpu.memory_space<vmem>>, vector<1x7x384xf32>,
    %576 = arith.mulf %502, %563 : vector<7x384xf32>
    %577 = arith.addf %576, %565 : vector<7x384xf32>
    %c2_153 = arith.constant 2 : index
    %c0_154 = arith.constant 0 : index
    %c0_155 = arith.constant 0 : index
    %578 = vector.load %arg5[%c2_153, %c0_154, %c0_155] : memref<7x7x384xf32, #tpu.memory_space<vmem>>, vector<1x7x384xf32>
    %579 = vector.shape_cast %578 : vector<1x7x384xf32> to vector<7x384xf32>
    %580 = vector.shape_cast %577 : vector<7x384xf32> to vector<1x7x384xf32>
    tpu.vector_store %arg5[%c2_153, %c0_154, %c0_155], %580 {strides = array<i32>} : memref<7x7x384xf32, #tpu.memory_space<vmem>>, vector<1x7x384xf32>,
    %581 = arith.mulf %514, %563 : vector<7x384xf32>
    %582 = arith.addf %581, %565 : vector<7x384xf32>
    %c3_156 = arith.constant 3 : index
    %c0_157 = arith.constant 0 : index
    %c0_158 = arith.constant 0 : index
    %583 = vector.load %arg5[%c3_156, %c0_157, %c0_158] : memref<7x7x384xf32, #tpu.memory_space<vmem>>, vector<1x7x384xf32>
    %584 = vector.shape_cast %583 : vector<1x7x384xf32> to vector<7x384xf32>
    %585 = vector.shape_cast %582 : vector<7x384xf32> to vector<1x7x384xf32>
    tpu.vector_store %arg5[%c3_156, %c0_157, %c0_158], %585 {strides = array<i32>} : memref<7x7x384xf32, #tpu.memory_space<vmem>>, vector<1x7x384xf32>,
    %586 = arith.mulf %524, %563 : vector<7x384xf32>
    %587 = arith.addf %586, %565 : vector<7x384xf32>
    %c4_159 = arith.constant 4 : index
    %c0_160 = arith.constant 0 : index
    %c0_161 = arith.constant 0 : index
    %588 = vector.load %arg5[%c4_159, %c0_160, %c0_161] : memref<7x7x384xf32, #tpu.memory_space<vmem>>, vector<1x7x384xf32>
    %589 = vector.shape_cast %588 : vector<1x7x384xf32> to vector<7x384xf32>
    %590 = vector.shape_cast %587 : vector<7x384xf32> to vector<1x7x384xf32>
    tpu.vector_store %arg5[%c4_159, %c0_160, %c0_161], %590 {strides = array<i32>} : memref<7x7x384xf32, #tpu.memory_space<vmem>>, vector<1x7x384xf32>,
    %591 = arith.mulf %522, %563 : vector<7x384xf32>
    %592 = arith.addf %591, %565 : vector<7x384xf32>
    %c5_162 = arith.constant 5 : index
    %c0_163 = arith.constant 0 : index
    %c0_164 = arith.constant 0 : index
    %593 = vector.load %arg5[%c5_162, %c0_163, %c0_164] : memref<7x7x384xf32, #tpu.memory_space<vmem>>, vector<1x7x384xf32>
    %594 = vector.shape_cast %593 : vector<1x7x384xf32> to vector<7x384xf32>
    %595 = vector.shape_cast %592 : vector<7x384xf32> to vector<1x7x384xf32>
    tpu.vector_store %arg5[%c5_162, %c0_163, %c0_164], %595 {strides = array<i32>} : memref<7x7x384xf32, #tpu.memory_space<vmem>>, vector<1x7x384xf32>,
    %596 = arith.mulf %520, %563 : vector<7x384xf32>
    %597 = arith.addf %596, %565 : vector<7x384xf32>
    %c6_165 = arith.constant 6 : index
    %c0_166 = arith.constant 0 : index
    %c0_167 = arith.constant 0 : index
    %598 = vector.load %arg5[%c6_165, %c0_166, %c0_167] : memref<7x7x384xf32, #tpu.memory_space<vmem>>, vector<1x7x384xf32>
    %599 = vector.shape_cast %598 : vector<1x7x384xf32> to vector<7x384xf32>
    %600 = vector.shape_cast %597 : vector<7x384xf32> to vector<1x7x384xf32>
    tpu.vector_store %arg5[%c6_165, %c0_166, %c0_167], %600 {strides = array<i32>} : memref<7x7x384xf32, #tpu.memory_space<vmem>>, vector<1x7x384xf32>,
    return
  }
  func.func @transform_0(%arg0: i32) -> (i32, i32, i32) {
    %c0_i32 = arith.constant 0 : i32
    %c0_i32_0 = arith.constant 0 : i32
    %c0_i32_1 = arith.constant 0 : i32
    return %c0_i32, %c0_i32_0, %arg0 : i32, i32, i32
  }
  func.func @transform_1(%arg0: i32) -> (i32, i32) {
    %c0_i32 = arith.constant 0 : i32
    %c0_i32_0 = arith.constant 0 : i32
    return %c0_i32, %arg0 : i32, i32
  }
  func.func @transform_2(%arg0: i32) -> (i32, i32) {
    %c0_i32 = arith.constant 0 : i32
    %c0_i32_0 = arith.constant 0 : i32
    return %c0_i32, %arg0 : i32, i32
  }
  func.func @transform_3(%arg0: i32) -> (i32, i32) {
    %c0_i32 = arith.constant 0 : i32
    %c0_i32_0 = arith.constant 0 : i32
    return %c0_i32, %arg0 : i32, i32
  }
  func.func @transform_4(%arg0: i32) -> (i32, i32, i32) {
    %c0_i32 = arith.constant 0 : i32
    %c0_i32_0 = arith.constant 0 : i32
    %c0_i32_1 = arith.constant 0 : i32
    return %c0_i32, %c0_i32_0, %arg0 : i32, i32, i32
  }
}

</mosaic_0001>

<llo_original>
// kernel: dwconv_bn.1
$region0: #{dwconv_bn.1}
  #allocation0 [shape = 'u32[]', space=smem, size = 0x4, offset = 0x4, fixed_abs, tag = 'smem constant byte address 0x4 - core index']
  #allocation1 [shape = 'u32[72,128]{1,0:T(1,128)}', space=vmem, size = 0x9000, scoped, tag = 'internal scratch']
  %s0 = inlined_call_operand.vmem [shape: f32[7,7,2304], index: 0, kind: input, shape index: {}]
  %s1 = inlined_call_operand.vmem [shape: f32[25,2304], index: 1, kind: input, shape index: {}]
  %s2 = inlined_call_operand.vmem [shape: f32[1,2304], index: 2, kind: input, shape index: {}]
  %s3 = inlined_call_operand.vmem [shape: f32[1,2304], index: 3, kind: input, shape index: {}]
  %s4 = inlined_call_operand.vmem [shape: f32[7,7,2304], index: 4, kind: output, shape index: {}]
  %s5 = sld [smem:[#allocation0]]
  $region114: #{dwconv_bn.1} parent=0
    _
  %s7 = ssub.s32 1, %s5
  %s8 = scalar_select 0, %s7, %s5
  $region1: #{dwconv_bn.1} parent=0
    #allocation2 [shape = 'u8[172032]{0}', space=vmem, size = 0x2a000, scoped, tag = 'input window, operand 0']
    #allocation3 [shape = 'u8[98304]{0}', space=vmem, size = 0x18000, scoped, tag = 'input window, operand 1']
    #allocation4 [shape = 'u8[172032]{0}', space=vmem, size = 0x2a000, scoped, tag = 'output window, operand 0']
    loop: start=0, step=1, limit=8
    $region2: #{dwconv_bn.1} parent=1 // loop_pre_header
      _
    $region3: #{dwconv_bn.1} parent=1 // loop_header
      %s10 = sphi 0, %s14
      %p11 = scmp.ge.s32.totalorder %s10, 8
      %s20 = sphi 0, %s22
      %s23 = sphi 0, %s20
      %s24 = sphi 0, %s23
      %s40 = sphi 0, %s24
      %s46 = sphi 0, %s48
      %s49 = sphi 0, %s46
      %s50 = sphi 0, %s49
      %s66 = sphi 0, %s50
      %s72 = sphi 0, %s74
      %s75 = sphi 0, %s72
      %s76 = sphi 0, %s75
      %s92 = sphi 0, %s76
      %s98 = sphi 0, %s100
      %s101 = sphi 0, %s98
      %s102 = sphi 0, %s101
      %s118 = sphi 0, %s102
      %s124 = sphi 0, %s126
      %s127 = sphi 0, %s124
      %s128 = sphi 0, %s127
      %s144 = sphi 0, %s128
    $region4: #{dwconv_bn.1} parent=1 // loop_header_branch
      %13 = sbr.rel (%p11) target = $region8
    $region5: #{dwconv_bn.1} parent=1 // loop_body
      %s15 = ssub.s32 %s10, 1
      %s16 = ssub.s32 %s10, 2
      %s17 = sadd.s32 %s10, 1
      %s18 = ssub.s32 %s10, %s17
      %p19 = scmp.eq.s32.totalorder %s18, 0
      %s21 = sadd.s32 %s20, 1
      %s22 = scalar_select %p19, %s20, %s21
      %p25 = pneg %p19
      %p26 = scmp.eq.s32.totalorder %s10, 5
      %p27 = por %p25, %p26
      %p28 = scmp.ne.s32.totalorder %s20, %s23
      %p29 = scmp.eq.s32.totalorder %s10, 0
      %p30 = por %p28, %p29
      %p31 = scmp.ne.s32.totalorder %s20, %s23
      %p32 = scmp.eq.s32.totalorder %s15, 5
      %p33 = por %p31, %p32
      %p34 = scmp.ne.s32.totalorder %s23, %s24
      %p35 = scmp.eq.s32.totalorder %s15, 0
      %p36 = por %p34, %p35
      %p37 = scmp.ne.s32.totalorder %s23, %s24
      %p38 = scmp.eq.s32.totalorder %s16, 5
      %p39 = por %p37, %p38
      %p41 = scmp.ne.s32.totalorder %s24, %s40
      %p42 = scmp.eq.s32.totalorder %s16, 0
      %p43 = por %p41, %p42
      %s44 = ssub.s32 %s10, %s17
      %p45 = scmp.eq.s32.totalorder %s44, 0
      %s47 = sadd.s32 %s46, 1
      %s48 = scalar_select %p45, %s46, %s47
      %p51 = pneg %p45
      %p52 = scmp.eq.s32.totalorder %s10, 5
      %p53 = por %p51, %p52
      %p54 = scmp.ne.s32.totalorder %s46, %s49
      %p55 = scmp.eq.s32.totalorder %s10, 0
      %p56 = por %p54, %p55
      %p57 = scmp.ne.s32.totalorder %s46, %s49
      %p58 = scmp.eq.s32.totalorder %s15, 5
      %p59 = por %p57, %p58
      %p60 = scmp.ne.s32.totalorder %s49, %s50
      %p61 = scmp.eq.s32.totalorder %s15, 0
      %p62 = por %p60, %p61
      %p63 = scmp.ne.s32.totalorder %s49, %s50
      %p64 = scmp.eq.s32.totalorder %s16, 5
      %p65 = por %p63, %p64
      %p67 = scmp.ne.s32.totalorder %s50, %s66
      %p68 = scmp.eq.s32.totalorder %s16, 0
      %p69 = por %p67, %p68
      %s70 = ssub.s32 %s10, %s17
      %p71 = scmp.eq.s32.totalorder %s70, 0
      %s73 = sadd.s32 %s72, 1
      %s74 = scalar_select %p71, %s72, %s73
      %p77 = pneg %p71
      %p78 = scmp.eq.s32.totalorder %s10, 5
      %p79 = por %p77, %p78
      %p80 = scmp.ne.s32.totalorder %s72, %s75
      %p81 = scmp.eq.s32.totalorder %s10, 0
      %p82 = por %p80, %p81
      %p83 = scmp.ne.s32.totalorder %s72, %s75
      %p84 = scmp.eq.s32.totalorder %s15, 5
      %p85 = por %p83, %p84
      %p86 = scmp.ne.s32.totalorder %s75, %s76
      %p87 = scmp.eq.s32.totalorder %s15, 0
      %p88 = por %p86, %p87
      %p89 = scmp.ne.s32.totalorder %s75, %s76
      %p90 = scmp.eq.s32.totalorder %s16, 5
      %p91 = por %p89, %p90
      %p93 = scmp.ne.s32.totalorder %s76, %s92
      %p94 = scmp.eq.s32.totalorder %s16, 0
      %p95 = por %p93, %p94
      %s96 = ssub.s32 %s10, %s17
      %p97 = scmp.eq.s32.totalorder %s96, 0
      %s99 = sadd.s32 %s98, 1
      %s100 = scalar_select %p97, %s98, %s99
      %p103 = pneg %p97
      %p104 = scmp.eq.s32.totalorder %s10, 5
      %p105 = por %p103, %p104
      %p106 = scmp.ne.s32.totalorder %s98, %s101
      %p107 = scmp.eq.s32.totalorder %s10, 0
      %p108 = por %p106, %p107
      %p109 = scmp.ne.s32.totalorder %s98, %s101
      %p110 = scmp.eq.s32.totalorder %s15, 5
      %p111 = por %p109, %p110
      %p112 = scmp.ne.s32.totalorder %s101, %s102
      %p113 = scmp.eq.s32.totalorder %s15, 0
      %p114 = por %p112, %p113
      %p115 = scmp.ne.s32.totalorder %s101, %s102
      %p116 = scmp.eq.s32.totalorder %s16, 5
      %p117 = por %p115, %p116
      %p119 = scmp.ne.s32.totalorder %s102, %s118
      %p120 = scmp.eq.s32.totalorder %s16, 0
      %p121 = por %p119, %p120
      %s122 = ssub.s32 %s10, %s17
      %p123 = scmp.eq.s32.totalorder %s122, 0
      %s125 = sadd.s32 %s124, 1
      %s126 = scalar_select %p123, %s124, %s125
      %p129 = pneg %p123
      %p130 = scmp.eq.s32.totalorder %s10, 5
      %p131 = por %p129, %p130
      %p132 = scmp.ne.s32.totalorder %s124, %s127
      %p133 = scmp.eq.s32.totalorder %s10, 0
      %p134 = por %p132, %p133
      %p135 = scmp.ne.s32.totalorder %s124, %s127
      %p136 = scmp.eq.s32.totalorder %s15, 5
      %p137 = por %p135, %p136
      %p138 = scmp.ne.s32.totalorder %s127, %s128
      %p139 = scmp.eq.s32.totalorder %s15, 0
      %p140 = por %p138, %p139
      %p141 = scmp.ne.s32.totalorder %s127, %s128
      %p142 = scmp.eq.s32.totalorder %s16, 5
      %p143 = por %p141, %p142
      %p145 = scmp.ne.s32.totalorder %s128, %s144
      %p146 = scmp.eq.s32.totalorder %s16, 0
      %p147 = por %p145, %p146
      %p148 = scmp.le.s32.totalorder 1, %s10
      %p149 = scmp.lt.s32.totalorder %s10, 7
      %p150 = pnand %p148, %p149
      %p151 = pneg %p150
      // Predicated region
      $region9: #{dwconv_bn.1} parent=5 // pred_check
        _
      $region10: #{dwconv_bn.1} parent=5 // pred_check_branch
        %153 = sbr.rel (%p150) target = $region12
      $region11: #{dwconv_bn.1} parent=5 // pred_region
        %s154 = ssub.s32 %s10, 1
      $region12: #{dwconv_bn.1} parent=5 // pred_fallthru
        _
      %p155 = scmp.lt.s32.totalorder %s10, 6
      // Predicated region
      $region13: #{dwconv_bn.1} parent=5 // pred_check
        %p156 = pneg %p155
      $region14: #{dwconv_bn.1} parent=5 // pred_check_branch
        %158 = sbr.rel (%p156) target = $region16
      $region15: #{dwconv_bn.1} parent=5 // pred_region
        // Predicated region
        $region17: #{dwconv_bn.1} parent=15 // pred_check
          %p159 = pneg %p30
        $region18: #{dwconv_bn.1} parent=15 // pred_check_branch
          %161 = sbr.rel (%p159) target = $region20
        $region19: #{dwconv_bn.1} parent=15 // pred_region
          %s162 = sand.u32 %s20, 1
          %s163 = sand.u32 %s20, 1
          %s164 = smul.addr %s163, 168
          %s165 = scalar_lea.vmem [#allocation2], %s164
          %s166 = smul.u32 3, %s10
          %s167 = smul.addr %s166, 8
          %s168 = scalar_lea.vmem %s0, %s167
          // Predicated region
          $region21: #{dwconv_bn.1} parent=19 // pred_check
            _
          $region22: #{dwconv_bn.1} parent=19 // pred_check_branch
            %170 = sbr.rel (0) target = $region24
          $region23: #{dwconv_bn.1} parent=19 // pred_region
            // Predicated region
            $region25: #{dwconv_bn.1} parent=23 // pred_check
              _
            $region26: #{dwconv_bn.1} parent=23 // pred_check_branch
              %172 = sbr.rel (0) target = $region28
            $region27: #{dwconv_bn.1} parent=23 // pred_region
              loop: start=0, step=1, limit=1
              $region29: #{dwconv_bn.1} parent=27 // loop_pre_header
                _
              $region30: #{dwconv_bn.1} parent=27 // loop_header
                %s174 = sphi 0, %s178
                %p175 = scmp.ge.s32.totalorder %s174, 1
                %s179 = sphi %s168, %s168
                %s180 = sphi %s165, %s165
              $region31: #{dwconv_bn.1} parent=27 // loop_header_branch
                %177 = sbr.rel (%p175) target = $region35
              $region32: #{dwconv_bn.1} parent=27 // loop_body
                %v181 = vld [vmem:[%s179] sm:$0xff]
                %182 = vst [vmem:[%s180] sm:$0xff] %v181
                %v183 = vld [vmem:[%s179 + $0x8] sm:$0xff]
                %184 = vst [vmem:[%s180 + $0x8] sm:$0xff] %v183
                %v185 = vld [vmem:[%s179 + $0x10] sm:$0xff]
                %186 = vst [vmem:[%s180 + $0x10] sm:$0xff] %v185
                %v187 = vld [vmem:[%s179 + $0x90] sm:$0xff]
                %188 = vst [vmem:[%s180 + $0x18] sm:$0xff] %v187
                %v189 = vld [vmem:[%s179 + $0x98] sm:$0xff]
                %190 = vst [vmem:[%s180 + $0x20] sm:$0xff] %v189
                %v191 = vld [vmem:[%s179 + $0xa0] sm:$0xff]
                %192 = vst [vmem:[%s180 + $0x28] sm:$0xff] %v191
                %v193 = vld [vmem:[%s179 + $0x120] sm:$0xff]
                %194 = vst [vmem:[%s180 + $0x30] sm:$0xff] %v193
                %v195 = vld [vmem:[%s179 + $0x128] sm:$0xff]
                %196 = vst [vmem:[%s180 + $0x38] sm:$0xff] %v195
                %v197 = vld [vmem:[%s179 + $0x130] sm:$0xff]
                %198 = vst [vmem:[%s180 + $0x40] sm:$0xff] %v197
                %v199 = vld [vmem:[%s179 + $0x1b0] sm:$0xff]
                %200 = vst [vmem:[%s180 + $0x48] sm:$0xff] %v199
                %v201 = vld [vmem:[%s179 + $0x1b8] sm:$0xff]
                %202 = vst [vmem:[%s180 + $0x50] sm:$0xff] %v201
                %v203 = vld [vmem:[%s179 + $0x1c0] sm:$0xff]
                %204 = vst [vmem:[%s180 + $0x58] sm:$0xff] %v203
                %v205 = vld [vmem:[%s179 + $0x240] sm:$0xff]
                %206 = vst [vmem:[%s180 + $0x60] sm:$0xff] %v205
                %v207 = vld [vmem:[%s179 + $0x248] sm:$0xff]
                %208 = vst [vmem:[%s180 + $0x68] sm:$0xff] %v207
                %v209 = vld [vmem:[%s179 + $0x250] sm:$0xff]
                %210 = vst [vmem:[%s180 + $0x70] sm:$0xff] %v209
                %v211 = vld [vmem:[%s179 + $0x2d0] sm:$0xff]
                %212 = vst [vmem:[%s180 + $0x78] sm:$0xff] %v211
                %v213 = vld [vmem:[%s179 + $0x2d8] sm:$0xff]
                %214 = vst [vmem:[%s180 + $0x80] sm:$0xff] %v213
                %v215 = vld [vmem:[%s179 + $0x2e0] sm:$0xff]
                %216 = vst [vmem:[%s180 + $0x88] sm:$0xff] %v215
                %v217 = vld [vmem:[%s179 + $0x360] sm:$0xff]
                %218 = vst [vmem:[%s180 + $0x90] sm:$0xff] %v217
                %v219 = vld [vmem:[%s179 + $0x368] sm:$0xff]
                %220 = vst [vmem:[%s180 + $0x98] sm:$0xff] %v219
                %v221 = vld [vmem:[%s179 + $0x370] sm:$0xff]
                %222 = vst [vmem:[%s180 + $0xa0] sm:$0xff] %v221
              $region33: #{dwconv_bn.1} parent=27 // loop_footer
                %s178 = sadd.s32 1, %s174
              $region34: #{dwconv_bn.1} parent=27 // loop_footer_branch
                %173 = sbr.rel target = $region30
              $region35: #{dwconv_bn.1} parent=27 // loop_exit
                _
            $region28: #{dwconv_bn.1} parent=23 // pred_fallthru
              _
            // Predicated region
            $region36: #{dwconv_bn.1} parent=23 // pred_check
              _
            $region37: #{dwconv_bn.1} parent=23 // pred_check_branch
              %224 = sbr.rel target = $region39
            $region38: #{dwconv_bn.1} parent=23 // pred_region
              _
            $region39: #{dwconv_bn.1} parent=23 // pred_fallthru
              _
          $region24: #{dwconv_bn.1} parent=19 // pred_fallthru
            _
          %225 = vnop
        $region20: #{dwconv_bn.1} parent=15 // pred_fallthru
          _
        // Predicated region
        $region40: #{dwconv_bn.1} parent=15 // pred_check
          %p226 = pneg %p56
        $region41: #{dwconv_bn.1} parent=15 // pred_check_branch
          %228 = sbr.rel (%p226) target = $region43
        $region42: #{dwconv_bn.1} parent=15 // pred_region
          %s229 = sand.u32 %s46, 1
          %s230 = sand.u32 %s46, 1
          %s231 = smul.addr %s230, 96
          %s232 = scalar_lea.vmem [#allocation3], %s231
          %s233 = smul.u32 3, %s10
          %s234 = smul.addr %s233, 8
          %s235 = scalar_lea.vmem %s1, %s234
          // Predicated region
          $region44: #{dwconv_bn.1} parent=42 // pred_check
            _
          $region45: #{dwconv_bn.1} parent=42 // pred_check_branch
            %237 = sbr.rel (0) target = $region47
          $region46: #{dwconv_bn.1} parent=42 // pred_region
            // Predicated region
            $region48: #{dwconv_bn.1} parent=46 // pred_check
              _
            $region49: #{dwconv_bn.1} parent=46 // pred_check_branch
              %239 = sbr.rel (0) target = $region51
            $region50: #{dwconv_bn.1} parent=46 // pred_region
              loop: start=0, step=1, limit=1
              $region52: #{dwconv_bn.1} parent=50 // loop_pre_header
                _
              $region53: #{dwconv_bn.1} parent=50 // loop_header
                %s241 = sphi 0, %s245
                %p242 = scmp.ge.s32.totalorder %s241, 1
                %s246 = sphi %s235, %s235
                %s247 = sphi %s232, %s232
              $region54: #{dwconv_bn.1} parent=50 // loop_header_branch
                %244 = sbr.rel (%p242) target = $region58
              $region55: #{dwconv_bn.1} parent=50 // loop_body
                %v248 = vld [vmem:[%s246] sm:$0xff]
                %249 = vst [vmem:[%s247] sm:$0xff] %v248
                %v250 = vld [vmem:[%s246 + $0x8] sm:$0xff]
                %251 = vst [vmem:[%s247 + $0x8] sm:$0xff] %v250
                %v252 = vld [vmem:[%s246 + $0x10] sm:$0xff]
                %253 = vst [vmem:[%s247 + $0x10] sm:$0xff] %v252
                %v254 = vld [vmem:[%s246 + $0x90] sm:$0xff]
                %255 = vst [vmem:[%s247 + $0x18] sm:$0xff] %v254
                %v256 = vld [vmem:[%s246 + $0x98] sm:$0xff]
                %257 = vst [vmem:[%s247 + $0x20] sm:$0xff] %v256
                %v258 = vld [vmem:[%s246 + $0xa0] sm:$0xff]
                %259 = vst [vmem:[%s247 + $0x28] sm:$0xff] %v258
                %v260 = vld [vmem:[%s246 + $0x120] sm:$0xff]
                %261 = vst [vmem:[%s247 + $0x30] sm:$0xff] %v260
                %v262 = vld [vmem:[%s246 + $0x128] sm:$0xff]
                %263 = vst [vmem:[%s247 + $0x38] sm:$0xff] %v262
                %v264 = vld [vmem:[%s246 + $0x130] sm:$0xff]
                %265 = vst [vmem:[%s247 + $0x40] sm:$0xff] %v264
                %v266 = vld [vmem:[%s246 + $0x1b0] sm:$0xff]
                %267 = vst [vmem:[%s247 + $0x48] sm:$0xff] %v266
                %v268 = vld [vmem:[%s246 + $0x1b8] sm:$0xff]
                %269 = vst [vmem:[%s247 + $0x50] sm:$0xff] %v268
                %v270 = vld [vmem:[%s246 + $0x1c0] sm:$0xff]
                %271 = vst [vmem:[%s247 + $0x58] sm:$0xff] %v270
              $region56: #{dwconv_bn.1} parent=50 // loop_footer
                %s245 = sadd.s32 1, %s241
              $region57: #{dwconv_bn.1} parent=50 // loop_footer_branch
                %240 = sbr.rel target = $region53
              $region58: #{dwconv_bn.1} parent=50 // loop_exit
                _
            $region51: #{dwconv_bn.1} parent=46 // pred_fallthru
              _
            // Predicated region
            $region59: #{dwconv_bn.1} parent=46 // pred_check
              _
            $region60: #{dwconv_bn.1} parent=46 // pred_check_branch
              %273 = sbr.rel target = $region62
            $region61: #{dwconv_bn.1} parent=46 // pred_region
              _
            $region62: #{dwconv_bn.1} parent=46 // pred_fallthru
              _
          $region47: #{dwconv_bn.1} parent=42 // pred_fallthru
            _
          %274 = vnop
        $region43: #{dwconv_bn.1} parent=15 // pred_fallthru
          _
        // Predicated region
        $region63: #{dwconv_bn.1} parent=15 // pred_check
          %p275 = pneg %p82
        $region64: #{dwconv_bn.1} parent=15 // pred_check_branch
          %277 = sbr.rel (%p275) target = $region66
        $region65: #{dwconv_bn.1} parent=15 // pred_region
          %s278 = smul.u32 3, %s10
          %p279 = scmp.lt.s32.totalorder %s278, 17
          %s280 = scalar_select %p279, %s278, 17
          %s281 = scalar_lea.vmem %s2, %s280
          %s282 = smul.u32 3, %s10
        $region66: #{dwconv_bn.1} parent=15 // pred_fallthru
          _
        // Predicated region
        $region67: #{dwconv_bn.1} parent=15 // pred_check
          %p283 = pneg %p108
        $region68: #{dwconv_bn.1} parent=15 // pred_check_branch
          %285 = sbr.rel (%p283) target = $region70
        $region69: #{dwconv_bn.1} parent=15 // pred_region
          %s286 = smul.u32 3, %s10
          %p287 = scmp.lt.s32.totalorder %s286, 17
          %s288 = scalar_select %p287, %s286, 17
          %s289 = scalar_lea.vmem %s3, %s288
          %s290 = smul.u32 3, %s10
        $region70: #{dwconv_bn.1} parent=15 // pred_fallthru
          _
      $region16: #{dwconv_bn.1} parent=5 // pred_fallthru
        _
      %p291 = scmp.le.s32.totalorder 1, %s10
      %p292 = scmp.lt.s32.totalorder %s10, 7
      %p293 = pnand %p291, %p292
      %p294 = pneg %p293
      // Predicated region
      $region71: #{dwconv_bn.1} parent=5 // pred_check
        _
      $region72: #{dwconv_bn.1} parent=5 // pred_check_branch
        %296 = sbr.rel (%p293) target = $region74
      $region73: #{dwconv_bn.1} parent=5 // pred_region
        %s297 = ssub.s32 %s10, 1
        %s298 = sand.u32 %s23, 1
        %s299 = sand.u32 %s23, 1
        %s300 = smul.addr %s299, 168
        %s301 = scalar_lea.vmem [#allocation2], %s300
        // Predicated region
        $region75: #{dwconv_bn.1} parent=73 // pred_check
          %p302 = pneg %p36
        $region76: #{dwconv_bn.1} parent=73 // pred_check_branch
          %304 = sbr.rel (%p302) target = $region78
        $region77: #{dwconv_bn.1} parent=73 // pred_region
          _
        $region78: #{dwconv_bn.1} parent=73 // pred_fallthru
          _
        %s305 = sand.u32 %s49, 1
        %s306 = sand.u32 %s49, 1
        %s307 = smul.addr %s306, 96
        %s308 = scalar_lea.vmem [#allocation3], %s307
        // Predicated region
        $region79: #{dwconv_bn.1} parent=73 // pred_check
          %p309 = pneg %p62
        $region80: #{dwconv_bn.1} parent=73 // pred_check_branch
          %311 = sbr.rel (%p309) target = $region82
        $region81: #{dwconv_bn.1} parent=73 // pred_region
          _
        $region82: #{dwconv_bn.1} parent=73 // pred_fallthru
          _
        %s312 = sand.u32 %s23, 1
        %s313 = sand.u32 %s23, 1
        %s314 = smul.addr %s313, 168
        %s315 = scalar_lea.vmem [#allocation2], %s314
        %p316 = pneg %p36
        %p317 = pneg %p33
        %s318 = sand.u32 %s49, 1
        %s319 = sand.u32 %s49, 1
        %s320 = smul.addr %s319, 96
        %s321 = scalar_lea.vmem [#allocation3], %s320
        %p322 = pneg %p62
        %p323 = pneg %p59
        %s324 = smul.u32 3, %s15
        %p325 = scmp.lt.s32.totalorder %s324, 17
        %s326 = scalar_select %p325, %s324, 17
        %s327 = scalar_lea.vmem %s2, %s326
        %p328 = pneg %p88
        %p329 = pneg %p85
        %s330 = smul.u32 3, %s15
        %p331 = scmp.lt.s32.totalorder %s330, 17
        %s332 = scalar_select %p331, %s330, 17
        %s333 = scalar_lea.vmem %s3, %s332
        %p334 = pneg %p114
        %p335 = pneg %p111
        %p336 = pneg %p140
        %p337 = pneg %p137
        %s338 = sand.u32 %s127, 1
        %s339 = sand.u32 %s127, 1
        %s340 = smul.addr %s339, 168
        %s341 = scalar_lea.vmem [#allocation4], %s340
        %s342 = smul.u32 3, %s15
        %s343 = smul.u32 3, %s15
        %s344 = smul.u32 3, %s15
        %p345 = scmp.lt.s32.totalorder %s344, 17
        %s346 = scalar_select %p345, %s344, 17
        %s347 = scalar_lea.vmem %s2, %s346
        %s348 = smul.u32 3, %s15
        %s349 = smul.u32 3, %s15
        %p350 = scmp.lt.s32.totalorder %s349, 17
        %s351 = scalar_select %p350, %s349, 17
        %s352 = scalar_lea.vmem %s3, %s351
        %s353 = smul.u32 3, %s15
        %s354 = smul.u32 3, %s15
        %v355 = vld [vmem:[%s308] ss:$8 sm:$0x7]
        %v357 = vperm.slane %v355, 0
        %v358 = vperm.slane %v355, 1
        %v359 = vperm.slane %v355, 2
        %s363 = scalar_lea.vmem %s308, 5 [#allocation3]
        %v364 = vld [vmem:[%s363] ss:$8 sm:$0x7]
        %v366 = vperm.slane %v364, 0
        %v367 = vperm.slane %v364, 1
        %v368 = vperm.slane %v364, 2
        %s372 = scalar_lea.vmem %s308, 26 [#allocation3]
        %v373 = vld [vmem:[%s372] ss:$8 sm:$0x7]
        %v375 = vperm.slane %v373, 0
        %v376 = vperm.slane %v373, 1
        %v377 = vperm.slane %v373, 2
        %s381 = scalar_lea.vmem %s308, 31 [#allocation3]
        %v382 = vld [vmem:[%s381] ss:$8 sm:$0x7]
        %v384 = vperm.slane %v382, 0
        %v385 = vperm.slane %v382, 1
        %v386 = vperm.slane %v382, 2
        %s390 = scalar_lea.vmem %s308, 52 [#allocation3]
        %v391 = vld [vmem:[%s390] ss:$8 sm:$0x7]
        %v393 = vperm.slane %v391, 0
        %v394 = vperm.slane %v391, 1
        %v395 = vperm.slane %v391, 2
        %v399 = vld [vmem:[%s301] sm:$0x7f]
        %v400 = vld [vmem:[%s301 + $0x8] sm:$0x7f]
        %v401 = vld [vmem:[%s301 + $0x10] sm:$0x7f]
        %v405 = vrot.slane %v399, 6
        %v406 = vrot.slane %v400, 6
        %v407 = vrot.slane %v401, 6
        %vm411 = vcmask 1041408
        %v412 = vsel %vm411, 0.0, %v405
        %v413 = vsel %vm411, 0.0, %v406
        %v414 = vsel %vm411, 0.0, %v407
        %v415 = vmul.f32 %v412, %v357
        %v416 = vmul.f32 %v413, %v358
        %v417 = vmul.f32 %v414, %v359
        %v418 = vadd.f32 %v415, 0.0
        %v419 = vadd.f32 %v416, 0.0
        %v420 = vadd.f32 %v417, 0.0
        %v421 = vmul.f32 %v412, %v366
        %v422 = vmul.f32 %v413, %v367
        %v423 = vmul.f32 %v414, %v368
        %v424 = vadd.f32 %v421, 0.0
        %v425 = vadd.f32 %v422, 0.0
        %v426 = vadd.f32 %v423, 0.0
        %v427 = vmul.f32 %v412, %v375
        %v428 = vmul.f32 %v413, %v376
        %v429 = vmul.f32 %v414, %v377
        %v430 = vadd.f32 %v427, 0.0
        %v431 = vadd.f32 %v428, 0.0
        %v432 = vadd.f32 %v429, 0.0
        %s433 = scalar_lea.vmem %s301, 24 [#allocation2]
        %v434 = vld [vmem:[%s433] sm:$0x7f]
        %v435 = vld [vmem:[%s433 + $0x8] sm:$0x7f]
        %v436 = vld [vmem:[%s433 + $0x10] sm:$0x7f]
        %v440 = vrot.slane %v434, 6
        %v441 = vrot.slane %v435, 6
        %v442 = vrot.slane %v436, 6
        %v446 = vsel %vm411, 0.0, %v440
        %v447 = vsel %vm411, 0.0, %v441
        %v448 = vsel %vm411, 0.0, %v442
        %v449 = vmul.f32 %v446, %v357
        %v450 = vmul.f32 %v447, %v358
        %v451 = vmul.f32 %v448, %v359
        %v452 = vadd.f32 %v449, 0.0
        %v453 = vadd.f32 %v450, 0.0
        %v454 = vadd.f32 %v451, 0.0
        %v455 = vmul.f32 %v446, %v366
        %v456 = vmul.f32 %v447, %v367
        %v457 = vmul.f32 %v448, %v368
        %v458 = vadd.f32 %v418, %v455
        %v459 = vadd.f32 %v419, %v456
        %v460 = vadd.f32 %v420, %v457
        %v461 = vmul.f32 %v446, %v375
        %v462 = vmul.f32 %v447, %v376
        %v463 = vmul.f32 %v448, %v377
        %v464 = vadd.f32 %v424, %v461
        %v465 = vadd.f32 %v425, %v462
        %v466 = vadd.f32 %v426, %v463
        %v467 = vmul.f32 %v446, %v384
        %v468 = vmul.f32 %v447, %v385
        %v469 = vmul.f32 %v448, %v386
        %v470 = vadd.f32 %v430, %v467
        %v471 = vadd.f32 %v431, %v468
        %v472 = vadd.f32 %v432, %v469
        %s473 = scalar_lea.vmem %s301, 48 [#allocation2]
        %v474 = vld [vmem:[%s473] sm:$0x7f]
        %v475 = vld [vmem:[%s473 + $0x8] sm:$0x7f]
        %v476 = vld [vmem:[%s473 + $0x10] sm:$0x7f]
        %v480 = vrot.slane %v474, 6
        %v481 = vrot.slane %v475, 6
        %v482 = vrot.slane %v476, 6
        %v486 = vsel %vm411, 0.0, %v480
        %v487 = vsel %vm411, 0.0, %v481
        %v488 = vsel %vm411, 0.0, %v482
        %v489 = vmul.f32 %v486, %v357
        %v490 = vmul.f32 %v487, %v358
        %v491 = vmul.f32 %v488, %v359
        %v492 = vadd.f32 %v489, 0.0
        %v493 = vadd.f32 %v490, 0.0
        %v494 = vadd.f32 %v491, 0.0
        %v495 = vmul.f32 %v486, %v366
        %v496 = vmul.f32 %v487, %v367
        %v497 = vmul.f32 %v488, %v368
        %v498 = vadd.f32 %v452, %v495
        %v499 = vadd.f32 %v453, %v496
        %v500 = vadd.f32 %v454, %v497
        %v501 = vmul.f32 %v486, %v375
        %v502 = vmul.f32 %v487, %v376
        %v503 = vmul.f32 %v488, %v377
        %v504 = vadd.f32 %v458, %v501
        %v505 = vadd.f32 %v459, %v502
        %v506 = vadd.f32 %v460, %v503
        %v507 = vmul.f32 %v486, %v384
        %v508 = vmul.f32 %v487, %v385
        %v509 = vmul.f32 %v488, %v386
        %v510 = vadd.f32 %v464, %v507
        %v511 = vadd.f32 %v465, %v508
        %v512 = vadd.f32 %v466, %v509
        %v513 = vmul.f32 %v486, %v393
        %v514 = vmul.f32 %v487, %v394
        %v515 = vmul.f32 %v488, %v395
        %v516 = vadd.f32 %v470, %v513
        %v517 = vadd.f32 %v471, %v514
        %v518 = vadd.f32 %v472, %v515
        %s519 = scalar_lea.vmem %s301, 72 [#allocation2]
        %v520 = vld [vmem:[%s519] sm:$0x7f]
        %v521 = vld [vmem:[%s519 + $0x8] sm:$0x7f]
        %v522 = vld [vmem:[%s519 + $0x10] sm:$0x7f]
        %v526 = vrot.slane %v520, 6
        %v527 = vrot.slane %v521, 6
        %v528 = vrot.slane %v522, 6
        %v532 = vsel %vm411, 0.0, %v526
        %v533 = vsel %vm411, 0.0, %v527
        %v534 = vsel %vm411, 0.0, %v528
        %v535 = vmul.f32 %v532, %v357
        %v536 = vmul.f32 %v533, %v358
        %v537 = vmul.f32 %v534, %v359
        %v538 = vadd.f32 %v535, 0.0
        %v539 = vadd.f32 %v536, 0.0
        %v540 = vadd.f32 %v537, 0.0
        %v541 = vmul.f32 %v532, %v366
        %v542 = vmul.f32 %v533, %v367
        %v543 = vmul.f32 %v534, %v368
        %v544 = vadd.f32 %v492, %v541
        %v545 = vadd.f32 %v493, %v542
        %v546 = vadd.f32 %v494, %v543
        %v547 = vmul.f32 %v532, %v375
        %v548 = vmul.f32 %v533, %v376
        %v549 = vmul.f32 %v534, %v377
        %v550 = vadd.f32 %v498, %v547
        %v551 = vadd.f32 %v499, %v548
        %v552 = vadd.f32 %v500, %v549
        %v553 = vmul.f32 %v532, %v384
        %v554 = vmul.f32 %v533, %v385
        %v555 = vmul.f32 %v534, %v386
        %v556 = vadd.f32 %v504, %v553
        %v557 = vadd.f32 %v505, %v554
        %v558 = vadd.f32 %v506, %v555
        %v559 = vmul.f32 %v532, %v393
        %v560 = vmul.f32 %v533, %v394
        %v561 = vmul.f32 %v534, %v395
        %v562 = vadd.f32 %v510, %v559
        %v563 = vadd.f32 %v511, %v560
        %v564 = vadd.f32 %v512, %v561
        %s565 = scalar_lea.vmem %s301, 96 [#allocation2]
        %v566 = vld [vmem:[%s565] sm:$0x7f]
        %v567 = vld [vmem:[%s565 + $0x8] sm:$0x7f]
        %v568 = vld [vmem:[%s565 + $0x10] sm:$0x7f]
        %v572 = vrot.slane %v566, 6
        %v573 = vrot.slane %v567, 6
        %v574 = vrot.slane %v568, 6
        %v578 = vsel %vm411, 0.0, %v572
        %v579 = vsel %vm411, 0.0, %v573
        %v580 = vsel %vm411, 0.0, %v574
        %v581 = vmul.f32 %v578, %v357
        %v582 = vmul.f32 %v579, %v358
        %v583 = vmul.f32 %v580, %v359
        %v584 = vadd.f32 %v581, 0.0
        %v585 = vadd.f32 %v582, 0.0
        %v586 = vadd.f32 %v583, 0.0
        %v587 = vmul.f32 %v578, %v366
        %v588 = vmul.f32 %v579, %v367
        %v589 = vmul.f32 %v580, %v368
        %v590 = vadd.f32 %v538, %v587
        %v591 = vadd.f32 %v539, %v588
        %v592 = vadd.f32 %v540, %v589
        %v593 = vmul.f32 %v578, %v375
        %v594 = vmul.f32 %v579, %v376
        %v595 = vmul.f32 %v580, %v377
        %v596 = vadd.f32 %v544, %v593
        %v597 = vadd.f32 %v545, %v594
        %v598 = vadd.f32 %v546, %v595
        %v599 = vmul.f32 %v578, %v384
        %v600 = vmul.f32 %v579, %v385
        %v601 = vmul.f32 %v580, %v386
        %v602 = vadd.f32 %v550, %v599
        %v603 = vadd.f32 %v551, %v600
        %v604 = vadd.f32 %v552, %v601
        %v605 = vmul.f32 %v578, %v393
        %v606 = vmul.f32 %v579, %v394
        %v607 = vmul.f32 %v580, %v395
        %v608 = vadd.f32 %v556, %v605
        %v609 = vadd.f32 %v557, %v606
        %v610 = vadd.f32 %v558, %v607
        %s611 = scalar_lea.vmem %s301, 120 [#allocation2]
        %v612 = vld [vmem:[%s611] sm:$0x7f]
        %v613 = vld [vmem:[%s611 + $0x8] sm:$0x7f]
        %v614 = vld [vmem:[%s611 + $0x10] sm:$0x7f]
        %v618 = vrot.slane %v612, 6
        %v619 = vrot.slane %v613, 6
        %v620 = vrot.slane %v614, 6
        %v624 = vsel %vm411, 0.0, %v618
        %v625 = vsel %vm411, 0.0, %v619
        %v626 = vsel %vm411, 0.0, %v620
        %v627 = vmul.f32 %v624, %v366
        %v628 = vmul.f32 %v625, %v367
        %v629 = vmul.f32 %v626, %v368
        %v630 = vadd.f32 %v584, %v627
        %v631 = vadd.f32 %v585, %v628
        %v632 = vadd.f32 %v586, %v629
        %v633 = vmul.f32 %v624, %v375
        %v634 = vmul.f32 %v625, %v376
        %v635 = vmul.f32 %v626, %v377
        %v636 = vadd.f32 %v590, %v633
        %v637 = vadd.f32 %v591, %v634
        %v638 = vadd.f32 %v592, %v635
        %v639 = vmul.f32 %v624, %v384
        %v640 = vmul.f32 %v625, %v385
        %v641 = vmul.f32 %v626, %v386
        %v642 = vadd.f32 %v596, %v639
        %v643 = vadd.f32 %v597, %v640
        %v644 = vadd.f32 %v598, %v641
        %v645 = vmul.f32 %v624, %v393
        %v646 = vmul.f32 %v625, %v394
        %v647 = vmul.f32 %v626, %v395
        %v648 = vadd.f32 %v602, %v645
        %v649 = vadd.f32 %v603, %v646
        %v650 = vadd.f32 %v604, %v647
        %s651 = scalar_lea.vmem %s301, 144 [#allocation2]
        %v652 = vld [vmem:[%s651] sm:$0x7f]
        %v653 = vld [vmem:[%s651 + $0x8] sm:$0x7f]
        %v654 = vld [vmem:[%s651 + $0x10] sm:$0x7f]
        %v658 = vrot.slane %v652, 6
        %v659 = vrot.slane %v653, 6
        %v660 = vrot.slane %v654, 6
        %v664 = vsel %vm411, 0.0, %v658
        %v665 = vsel %vm411, 0.0, %v659
        %v666 = vsel %vm411, 0.0, %v660
        %v667 = vmul.f32 %v664, %v375
        %v668 = vmul.f32 %v665, %v376
        %v669 = vmul.f32 %v666, %v377
        %v670 = vadd.f32 %v630, %v667
        %v671 = vadd.f32 %v631, %v668
        %v672 = vadd.f32 %v632, %v669
        %v673 = vmul.f32 %v664, %v384
        %v674 = vmul.f32 %v665, %v385
        %v675 = vmul.f32 %v666, %v386
        %v676 = vadd.f32 %v636, %v673
        %v677 = vadd.f32 %v637, %v674
        %v678 = vadd.f32 %v638, %v675
        %v679 = vmul.f32 %v664, %v393
        %v680 = vmul.f32 %v665, %v394
        %v681 = vmul.f32 %v666, %v395
        %v682 = vadd.f32 %v642, %v679
        %v683 = vadd.f32 %v643, %v680
        %v684 = vadd.f32 %v644, %v681
        %s685 = scalar_lea.vmem %s308, 1 [#allocation3]
        %v686 = vld [vmem:[%s685] ss:$8 sm:$0x7]
        %v688 = vperm.slane %v686, 0
        %v689 = vperm.slane %v686, 1
        %v690 = vperm.slane %v686, 2
        %s694 = scalar_lea.vmem %s308, 6 [#allocation3]
        %v695 = vld [vmem:[%s694] ss:$8 sm:$0x7]
        %v697 = vperm.slane %v695, 0
        %v698 = vperm.slane %v695, 1
        %v699 = vperm.slane %v695, 2
        %s703 = scalar_lea.vmem %s308, 27 [#allocation3]
        %v704 = vld [vmem:[%s703] ss:$8 sm:$0x7]
        %v706 = vperm.slane %v704, 0
        %v707 = vperm.slane %v704, 1
        %v708 = vperm.slane %v704, 2
        %s712 = scalar_lea.vmem %s308, 48 [#allocation3]
        %v713 = vld [vmem:[%s712] ss:$8 sm:$0x7]
        %v715 = vperm.slane %v713, 0
        %v716 = vperm.slane %v713, 1
        %v717 = vperm.slane %v713, 2
        %s721 = scalar_lea.vmem %s308, 53 [#allocation3]
        %v722 = vld [vmem:[%s721] ss:$8 sm:$0x7]
        %v724 = vperm.slane %v722, 0
        %v725 = vperm.slane %v722, 1
        %v726 = vperm.slane %v722, 2
        %v730 = vrot.slane %v399, 7
        %v731 = vrot.slane %v400, 7
        %v732 = vrot.slane %v401, 7
        %vm736 = vcmask 1040384
        %v737 = vsel %vm736, 0.0, %v730
        %v738 = vsel %vm736, 0.0, %v731
        %v739 = vsel %vm736, 0.0, %v732
        %v740 = vmul.f32 %v737, %v688
        %v741 = vmul.f32 %v738, %v689
        %v742 = vmul.f32 %v739, %v690
        %v743 = vadd.f32 %v608, %v740
        %v744 = vadd.f32 %v609, %v741
        %v745 = vadd.f32 %v610, %v742
        %v746 = vmul.f32 %v737, %v697
        %v747 = vmul.f32 %v738, %v698
        %v748 = vmul.f32 %v739, %v699
        %v749 = vadd.f32 %v562, %v746
        %v750 = vadd.f32 %v563, %v747
        %v751 = vadd.f32 %v564, %v748
        %v752 = vmul.f32 %v737, %v706
        %v753 = vmul.f32 %v738, %v707
        %v754 = vmul.f32 %v739, %v708
        %v755 = vadd.f32 %v516, %v752
        %v756 = vadd.f32 %v517, %v753
        %v757 = vadd.f32 %v518, %v754
        %v758 = vrot.slane %v434, 7
        %v759 = vrot.slane %v435, 7
        %v760 = vrot.slane %v436, 7
        %v764 = vsel %vm736, 0.0, %v758
        %v765 = vsel %vm736, 0.0, %v759
        %v766 = vsel %vm736, 0.0, %v760
        %v767 = vmul.f32 %v764, %v688
        %v768 = vmul.f32 %v765, %v689
        %v769 = vmul.f32 %v766, %v690
        %v770 = vadd.f32 %v648, %v767
        %v771 = vadd.f32 %v649, %v768
        %v772 = vadd.f32 %v650, %v769
        %v773 = vmul.f32 %v764, %v697
        %v774 = vmul.f32 %v765, %v698
        %v775 = vmul.f32 %v766, %v699
        %v776 = vadd.f32 %v743, %v773
        %v777 = vadd.f32 %v744, %v774
        %v778 = vadd.f32 %v745, %v775
        %v779 = vmul.f32 %v764, %v706
        %v780 = vmul.f32 %v765, %v707
        %v781 = vmul.f32 %v766, %v708
        %v782 = vadd.f32 %v749, %v779
        %v783 = vadd.f32 %v750, %v780
        %v784 = vadd.f32 %v751, %v781
        %v785 = vmul.f32 %v764, %v715
        %v786 = vmul.f32 %v765, %v716
        %v787 = vmul.f32 %v766, %v717
        %v788 = vadd.f32 %v755, %v785
        %v789 = vadd.f32 %v756, %v786
        %v790 = vadd.f32 %v757, %v787
        %v791 = vrot.slane %v474, 7
        %v792 = vrot.slane %v475, 7
        %v793 = vrot.slane %v476, 7
        %v797 = vsel %vm736, 0.0, %v791
        %v798 = vsel %vm736, 0.0, %v792
        %v799 = vsel %vm736, 0.0, %v793
        %v800 = vmul.f32 %v797, %v688
        %v801 = vmul.f32 %v798, %v689
        %v802 = vmul.f32 %v799, %v690
        %v803 = vadd.f32 %v682, %v800
        %v804 = vadd.f32 %v683, %v801
        %v805 = vadd.f32 %v684, %v802
        %v806 = vmul.f32 %v797, %v697
        %v807 = vmul.f32 %v798, %v698
        %v808 = vmul.f32 %v799, %v699
        %v809 = vadd.f32 %v770, %v806
        %v810 = vadd.f32 %v771, %v807
        %v811 = vadd.f32 %v772, %v808
        %v812 = vmul.f32 %v797, %v706
        %v813 = vmul.f32 %v798, %v707
        %v814 = vmul.f32 %v799, %v708
        %v815 = vadd.f32 %v776, %v812
        %v816 = vadd.f32 %v777, %v813
        %v817 = vadd.f32 %v778, %v814
        %v818 = vmul.f32 %v797, %v715
        %v819 = vmul.f32 %v798, %v716
        %v820 = vmul.f32 %v799, %v717
        %v821 = vadd.f32 %v782, %v818
        %v822 = vadd.f32 %v783, %v819
        %v823 = vadd.f32 %v784, %v820
        %v824 = vmul.f32 %v797, %v724
        %v825 = vmul.f32 %v798, %v725
        %v826 = vmul.f32 %v799, %v726
        %v827 = vadd.f32 %v788, %v824
        %v828 = vadd.f32 %v789, %v825
        %v829 = vadd.f32 %v790, %v826
        %v830 = vrot.slane %v520, 7
        %v831 = vrot.slane %v521, 7
        %v832 = vrot.slane %v522, 7
        %v836 = vsel %vm736, 0.0, %v830
        %v837 = vsel %vm736, 0.0, %v831
        %v838 = vsel %vm736, 0.0, %v832
        %v839 = vmul.f32 %v836, %v688
        %v840 = vmul.f32 %v837, %v689
        %v841 = vmul.f32 %v838, %v690
        %v842 = vadd.f32 %v676, %v839
        %v843 = vadd.f32 %v677, %v840
        %v844 = vadd.f32 %v678, %v841
        %v845 = vmul.f32 %v836, %v697
        %v846 = vmul.f32 %v837, %v698
        %v847 = vmul.f32 %v838, %v699
        %v848 = vadd.f32 %v803, %v845
        %v849 = vadd.f32 %v804, %v846
        %v850 = vadd.f32 %v805, %v847
        %v851 = vmul.f32 %v836, %v706
        %v852 = vmul.f32 %v837, %v707
        %v853 = vmul.f32 %v838, %v708
        %v854 = vadd.f32 %v809, %v851
        %v855 = vadd.f32 %v810, %v852
        %v856 = vadd.f32 %v811, %v853
        %v857 = vmul.f32 %v836, %v715
        %v858 = vmul.f32 %v837, %v716
        %v859 = vmul.f32 %v838, %v717
        %v860 = vadd.f32 %v815, %v857
        %v861 = vadd.f32 %v816, %v858
        %v862 = vadd.f32 %v817, %v859
        %v863 = vmul.f32 %v836, %v724
        %v864 = vmul.f32 %v837, %v725
        %v865 = vmul.f32 %v838, %v726
        %v866 = vadd.f32 %v821, %v863
        %v867 = vadd.f32 %v822, %v864
        %v868 = vadd.f32 %v823, %v865
        %v869 = vrot.slane %v566, 7
        %v870 = vrot.slane %v567, 7
        %v871 = vrot.slane %v568, 7
        %v875 = vsel %vm736, 0.0, %v869
        %v876 = vsel %vm736, 0.0, %v870
        %v877 = vsel %vm736, 0.0, %v871
        %v878 = vmul.f32 %v875, %v688
        %v879 = vmul.f32 %v876, %v689
        %v880 = vmul.f32 %v877, %v690
        %v881 = vadd.f32 %v670, %v878
        %v882 = vadd.f32 %v671, %v879
        %v883 = vadd.f32 %v672, %v880
        %v884 = vmul.f32 %v875, %v697
        %v885 = vmul.f32 %v876, %v698
        %v886 = vmul.f32 %v877, %v699
        %v887 = vadd.f32 %v842, %v884
        %v888 = vadd.f32 %v843, %v885
        %v889 = vadd.f32 %v844, %v886
        %v890 = vmul.f32 %v875, %v706
        %v891 = vmul.f32 %v876, %v707
        %v892 = vmul.f32 %v877, %v708
        %v893 = vadd.f32 %v848, %v890
        %v894 = vadd.f32 %v849, %v891
        %v895 = vadd.f32 %v850, %v892
        %v896 = vmul.f32 %v875, %v715
        %v897 = vmul.f32 %v876, %v716
        %v898 = vmul.f32 %v877, %v717
        %v899 = vadd.f32 %v854, %v896
        %v900 = vadd.f32 %v855, %v897
        %v901 = vadd.f32 %v856, %v898
        %v902 = vmul.f32 %v875, %v724
        %v903 = vmul.f32 %v876, %v725
        %v904 = vmul.f32 %v877, %v726
        %v905 = vadd.f32 %v860, %v902
        %v906 = vadd.f32 %v861, %v903
        %v907 = vadd.f32 %v862, %v904
        %v908 = vrot.slane %v612, 7
        %v909 = vrot.slane %v613, 7
        %v910 = vrot.slane %v614, 7
        %v914 = vsel %vm736, 0.0, %v908
        %v915 = vsel %vm736, 0.0, %v909
        %v916 = vsel %vm736, 0.0, %v910
        %v917 = vmul.f32 %v914, %v697
        %v918 = vmul.f32 %v915, %v698
        %v919 = vmul.f32 %v916, %v699
        %v920 = vadd.f32 %v881, %v917
        %v921 = vadd.f32 %v882, %v918
        %v922 = vadd.f32 %v883, %v919
        %v923 = vmul.f32 %v914, %v706
        %v924 = vmul.f32 %v915, %v707
        %v925 = vmul.f32 %v916, %v708
        %v926 = vadd.f32 %v887, %v923
        %v927 = vadd.f32 %v888, %v924
        %v928 = vadd.f32 %v889, %v925
        %v929 = vmul.f32 %v914, %v715
        %v930 = vmul.f32 %v915, %v716
        %v931 = vmul.f32 %v916, %v717
        %v932 = vadd.f32 %v893, %v929
        %v933 = vadd.f32 %v894, %v930
        %v934 = vadd.f32 %v895, %v931
        %v935 = vmul.f32 %v914, %v724
        %v936 = vmul.f32 %v915, %v725
        %v937 = vmul.f32 %v916, %v726
        %v938 = vadd.f32 %v899, %v935
        %v939 = vadd.f32 %v900, %v936
        %v940 = vadd.f32 %v901, %v937
        %v941 = vrot.slane %v652, 7
        %v942 = vrot.slane %v653, 7
        %v943 = vrot.slane %v654, 7
        %v947 = vsel %vm736, 0.0, %v941
        %v948 = vsel %vm736, 0.0, %v942
        %v949 = vsel %vm736, 0.0, %v943
        %v950 = vmul.f32 %v947, %v706
        %v951 = vmul.f32 %v948, %v707
        %v952 = vmul.f32 %v949, %v708
        %v953 = vadd.f32 %v920, %v950
        %v954 = vadd.f32 %v921, %v951
        %v955 = vadd.f32 %v922, %v952
        %v956 = vmul.f32 %v947, %v715
        %v957 = vmul.f32 %v948, %v716
        %v958 = vmul.f32 %v949, %v717
        %v959 = vadd.f32 %v926, %v956
        %v960 = vadd.f32 %v927, %v957
        %v961 = vadd.f32 %v928, %v958
        %v962 = vmul.f32 %v947, %v724
        %v963 = vmul.f32 %v948, %v725
        %v964 = vmul.f32 %v949, %v726
        %v965 = vadd.f32 %v932, %v962
        %v966 = vadd.f32 %v933, %v963
        %v967 = vadd.f32 %v934, %v964
        %s968 = scalar_lea.vmem %s308, 2 [#allocation3]
        %v969 = vld [vmem:[%s968] ss:$8 sm:$0x7]
        %v971 = vperm.slane %v969, 0
        %v972 = vperm.slane %v969, 1
        %v973 = vperm.slane %v969, 2
        %s977 = scalar_lea.vmem %s308, 7 [#allocation3]
        %v978 = vld [vmem:[%s977] ss:$8 sm:$0x7]
        %v980 = vperm.slane %v978, 0
        %v981 = vperm.slane %v978, 1
        %v982 = vperm.slane %v978, 2
        %s986 = scalar_lea.vmem %s308, 28 [#allocation3]
        %v987 = vld [vmem:[%s986] ss:$8 sm:$0x7]
        %v989 = vperm.slane %v987, 0
        %v990 = vperm.slane %v987, 1
        %v991 = vperm.slane %v987, 2
        %s995 = scalar_lea.vmem %s308, 49 [#allocation3]
        %v996 = vld [vmem:[%s995] ss:$8 sm:$0x7]
        %v998 = vperm.slane %v996, 0
        %v999 = vperm.slane %v996, 1
        %v1000 = vperm.slane %v996, 2
        %s1004 = scalar_lea.vmem %s308, 54 [#allocation3]
        %v1005 = vld [vmem:[%s1004] ss:$8 sm:$0x7]
        %v1007 = vperm.slane %v1005, 0
        %v1008 = vperm.slane %v1005, 1
        %v1009 = vperm.slane %v1005, 2
        %v1013 = vmul.f32 %v399, %v971
        %v1014 = vmul.f32 %v400, %v972
        %v1015 = vmul.f32 %v401, %v973
        %v1016 = vadd.f32 %v905, %v1013
        %v1017 = vadd.f32 %v906, %v1014
        %v1018 = vadd.f32 %v907, %v1015
        %v1019 = vmul.f32 %v399, %v980
        %v1020 = vmul.f32 %v400, %v981
        %v1021 = vmul.f32 %v401, %v982
        %v1022 = vadd.f32 %v866, %v1019
        %v1023 = vadd.f32 %v867, %v1020
        %v1024 = vadd.f32 %v868, %v1021
        %v1025 = vmul.f32 %v399, %v989
        %v1026 = vmul.f32 %v400, %v990
        %v1027 = vmul.f32 %v401, %v991
        %v1028 = vadd.f32 %v827, %v1025
        %v1029 = vadd.f32 %v828, %v1026
        %v1030 = vadd.f32 %v829, %v1027
        %v1031 = vmul.f32 %v434, %v971
        %v1032 = vmul.f32 %v435, %v972
        %v1033 = vmul.f32 %v436, %v973
        %v1034 = vadd.f32 %v938, %v1031
        %v1035 = vadd.f32 %v939, %v1032
        %v1036 = vadd.f32 %v940, %v1033
        %v1037 = vmul.f32 %v434, %v980
        %v1038 = vmul.f32 %v435, %v981
        %v1039 = vmul.f32 %v436, %v982
        %v1040 = vadd.f32 %v1016, %v1037
        %v1041 = vadd.f32 %v1017, %v1038
        %v1042 = vadd.f32 %v1018, %v1039
        %v1043 = vmul.f32 %v434, %v989
        %v1044 = vmul.f32 %v435, %v990
        %v1045 = vmul.f32 %v436, %v991
        %v1046 = vadd.f32 %v1022, %v1043
        %v1047 = vadd.f32 %v1023, %v1044
        %v1048 = vadd.f32 %v1024, %v1045
        %v1049 = vmul.f32 %v434, %v998
        %v1050 = vmul.f32 %v435, %v999
        %v1051 = vmul.f32 %v436, %v1000
        %v1052 = vadd.f32 %v1028, %v1049
        %v1053 = vadd.f32 %v1029, %v1050
        %v1054 = vadd.f32 %v1030, %v1051
        %v1055 = vmul.f32 %v474, %v971
        %v1056 = vmul.f32 %v475, %v972
        %v1057 = vmul.f32 %v476, %v973
        %v1058 = vadd.f32 %v965, %v1055
        %v1059 = vadd.f32 %v966, %v1056
        %v1060 = vadd.f32 %v967, %v1057
        %v1061 = vmul.f32 %v474, %v980
        %v1062 = vmul.f32 %v475, %v981
        %v1063 = vmul.f32 %v476, %v982
        %v1064 = vadd.f32 %v1034, %v1061
        %v1065 = vadd.f32 %v1035, %v1062
        %v1066 = vadd.f32 %v1036, %v1063
        %v1067 = vmul.f32 %v474, %v989
        %v1068 = vmul.f32 %v475, %v990
        %v1069 = vmul.f32 %v476, %v991
        %v1070 = vadd.f32 %v1040, %v1067
        %v1071 = vadd.f32 %v1041, %v1068
        %v1072 = vadd.f32 %v1042, %v1069
        %v1073 = vmul.f32 %v474, %v998
        %v1074 = vmul.f32 %v475, %v999
        %v1075 = vmul.f32 %v476, %v1000
        %v1076 = vadd.f32 %v1046, %v1073
        %v1077 = vadd.f32 %v1047, %v1074
        %v1078 = vadd.f32 %v1048, %v1075
        %v1079 = vmul.f32 %v474, %v1007
        %v1080 = vmul.f32 %v475, %v1008
        %v1081 = vmul.f32 %v476, %v1009
        %v1082 = vadd.f32 %v1052, %v1079
        %v1083 = vadd.f32 %v1053, %v1080
        %v1084 = vadd.f32 %v1054, %v1081
        %v1085 = vmul.f32 %v520, %v971
        %v1086 = vmul.f32 %v521, %v972
        %v1087 = vmul.f32 %v522, %v973
        %v1088 = vadd.f32 %v959, %v1085
        %v1089 = vadd.f32 %v960, %v1086
        %v1090 = vadd.f32 %v961, %v1087
        %v1091 = vmul.f32 %v520, %v980
        %v1092 = vmul.f32 %v521, %v981
        %v1093 = vmul.f32 %v522, %v982
        %v1094 = vadd.f32 %v1058, %v1091
        %v1095 = vadd.f32 %v1059, %v1092
        %v1096 = vadd.f32 %v1060, %v1093
        %v1097 = vmul.f32 %v520, %v989
        %v1098 = vmul.f32 %v521, %v990
        %v1099 = vmul.f32 %v522, %v991
        %v1100 = vadd.f32 %v1064, %v1097
        %v1101 = vadd.f32 %v1065, %v1098
        %v1102 = vadd.f32 %v1066, %v1099
        %v1103 = vmul.f32 %v520, %v998
        %v1104 = vmul.f32 %v521, %v999
        %v1105 = vmul.f32 %v522, %v1000
        %v1106 = vadd.f32 %v1070, %v1103
        %v1107 = vadd.f32 %v1071, %v1104
        %v1108 = vadd.f32 %v1072, %v1105
        %v1109 = vmul.f32 %v520, %v1007
        %v1110 = vmul.f32 %v521, %v1008
        %v1111 = vmul.f32 %v522, %v1009
        %v1112 = vadd.f32 %v1076, %v1109
        %v1113 = vadd.f32 %v1077, %v1110
        %v1114 = vadd.f32 %v1078, %v1111
        %v1115 = vmul.f32 %v566, %v971
        %v1116 = vmul.f32 %v567, %v972
        %v1117 = vmul.f32 %v568, %v973
        %v1118 = vadd.f32 %v953, %v1115
        %v1119 = vadd.f32 %v954, %v1116
        %v1120 = vadd.f32 %v955, %v1117
        %v1121 = vmul.f32 %v566, %v980
        %v1122 = vmul.f32 %v567, %v981
        %v1123 = vmul.f32 %v568, %v982
        %v1124 = vadd.f32 %v1088, %v1121
        %v1125 = vadd.f32 %v1089, %v1122
        %v1126 = vadd.f32 %v1090, %v1123
        %v1127 = vmul.f32 %v566, %v989
        %v1128 = vmul.f32 %v567, %v990
        %v1129 = vmul.f32 %v568, %v991
        %v1130 = vadd.f32 %v1094, %v1127
        %v1131 = vadd.f32 %v1095, %v1128
        %v1132 = vadd.f32 %v1096, %v1129
        %v1133 = vmul.f32 %v566, %v998
        %v1134 = vmul.f32 %v567, %v999
        %v1135 = vmul.f32 %v568, %v1000
        %v1136 = vadd.f32 %v1100, %v1133
        %v1137 = vadd.f32 %v1101, %v1134
        %v1138 = vadd.f32 %v1102, %v1135
        %v1139 = vmul.f32 %v566, %v1007
        %v1140 = vmul.f32 %v567, %v1008
        %v1141 = vmul.f32 %v568, %v1009
        %v1142 = vadd.f32 %v1106, %v1139
        %v1143 = vadd.f32 %v1107, %v1140
        %v1144 = vadd.f32 %v1108, %v1141
        %v1145 = vmul.f32 %v612, %v980
        %v1146 = vmul.f32 %v613, %v981
        %v1147 = vmul.f32 %v614, %v982
        %v1148 = vadd.f32 %v1118, %v1145
        %v1149 = vadd.f32 %v1119, %v1146
        %v1150 = vadd.f32 %v1120, %v1147
        %v1151 = vmul.f32 %v612, %v989
        %v1152 = vmul.f32 %v613, %v990
        %v1153 = vmul.f32 %v614, %v991
        %v1154 = vadd.f32 %v1124, %v1151
        %v1155 = vadd.f32 %v1125, %v1152
        %v1156 = vadd.f32 %v1126, %v1153
        %v1157 = vmul.f32 %v612, %v998
        %v1158 = vmul.f32 %v613, %v999
        %v1159 = vmul.f32 %v614, %v1000
        %v1160 = vadd.f32 %v1130, %v1157
        %v1161 = vadd.f32 %v1131, %v1158
        %v1162 = vadd.f32 %v1132, %v1159
        %v1163 = vmul.f32 %v612, %v1007
        %v1164 = vmul.f32 %v613, %v1008
        %v1165 = vmul.f32 %v614, %v1009
        %v1166 = vadd.f32 %v1136, %v1163
        %v1167 = vadd.f32 %v1137, %v1164
        %v1168 = vadd.f32 %v1138, %v1165
        %v1169 = vmul.f32 %v652, %v989
        %v1170 = vmul.f32 %v653, %v990
        %v1171 = vmul.f32 %v654, %v991
        %v1172 = vadd.f32 %v1148, %v1169
        %v1173 = vadd.f32 %v1149, %v1170
        %v1174 = vadd.f32 %v1150, %v1171
        %v1175 = vmul.f32 %v652, %v998
        %v1176 = vmul.f32 %v653, %v999
        %v1177 = vmul.f32 %v654, %v1000
        %v1178 = vadd.f32 %v1154, %v1175
        %v1179 = vadd.f32 %v1155, %v1176
        %v1180 = vadd.f32 %v1156, %v1177
        %v1181 = vmul.f32 %v652, %v1007
        %v1182 = vmul.f32 %v653, %v1008
        %v1183 = vmul.f32 %v654, %v1009
        %v1184 = vadd.f32 %v1160, %v1181
        %v1185 = vadd.f32 %v1161, %v1182
        %v1186 = vadd.f32 %v1162, %v1183
        %s1187 = scalar_lea.vmem %s308, 3 [#allocation3]
        %v1188 = vld [vmem:[%s1187] ss:$8 sm:$0x7]
        %v1190 = vperm.slane %v1188, 0
        %v1191 = vperm.slane %v1188, 1
        %v1192 = vperm.slane %v1188, 2
        %s1196 = scalar_lea.vmem %s308, 24 [#allocation3]
        %v1197 = vld [vmem:[%s1196] ss:$8 sm:$0x7]
        %v1199 = vperm.slane %v1197, 0
        %v1200 = vperm.slane %v1197, 1
        %v1201 = vperm.slane %v1197, 2
        %s1205 = scalar_lea.vmem %s308, 29 [#allocation3]
        %v1206 = vld [vmem:[%s1205] ss:$8 sm:$0x7]
        %v1208 = vperm.slane %v1206, 0
        %v1209 = vperm.slane %v1206, 1
        %v1210 = vperm.slane %v1206, 2
        %s1214 = scalar_lea.vmem %s308, 50 [#allocation3]
        %v1215 = vld [vmem:[%s1214] ss:$8 sm:$0x7]
        %v1217 = vperm.slane %v1215, 0
        %v1218 = vperm.slane %v1215, 1
        %v1219 = vperm.slane %v1215, 2
        %s1223 = scalar_lea.vmem %s308, 55 [#allocation3]
        %v1224 = vld [vmem:[%s1223] ss:$8 sm:$0x7]
        %v1226 = vperm.slane %v1224, 0
        %v1227 = vperm.slane %v1224, 1
        %v1228 = vperm.slane %v1224, 2
        %v1232 = vrot.slane %v399, 1
        %v1233 = vrot.slane %v400, 1
        %v1234 = vrot.slane %v401, 1
        %vm1238 = vcmask 1045504
        %v1239 = vsel %vm1238, %v1232, 0.0
        %v1240 = vsel %vm1238, %v1233, 0.0
        %v1241 = vsel %vm1238, %v1234, 0.0
        %v1242 = vmul.f32 %v1239, %v1190
        %v1243 = vmul.f32 %v1240, %v1191
        %v1244 = vmul.f32 %v1241, %v1192
        %v1245 = vadd.f32 %v1142, %v1242
        %v1246 = vadd.f32 %v1143, %v1243
        %v1247 = vadd.f32 %v1144, %v1244
        %v1248 = vmul.f32 %v1239, %v1199
        %v1249 = vmul.f32 %v1240, %v1200
        %v1250 = vmul.f32 %v1241, %v1201
        %v1251 = vadd.f32 %v1112, %v1248
        %v1252 = vadd.f32 %v1113, %v1249
        %v1253 = vadd.f32 %v1114, %v1250
        %v1254 = vmul.f32 %v1239, %v1208
        %v1255 = vmul.f32 %v1240, %v1209
        %v1256 = vmul.f32 %v1241, %v1210
        %v1257 = vadd.f32 %v1082, %v1254
        %v1258 = vadd.f32 %v1083, %v1255
        %v1259 = vadd.f32 %v1084, %v1256
        %v1260 = vrot.slane %v434, 1
        %v1261 = vrot.slane %v435, 1
        %v1262 = vrot.slane %v436, 1
        %v1266 = vsel %vm1238, %v1260, 0.0
        %v1267 = vsel %vm1238, %v1261, 0.0
        %v1268 = vsel %vm1238, %v1262, 0.0
        %v1269 = vmul.f32 %v1266, %v1190
        %v1270 = vmul.f32 %v1267, %v1191
        %v1271 = vmul.f32 %v1268, %v1192
        %v1272 = vadd.f32 %v1166, %v1269
        %v1273 = vadd.f32 %v1167, %v1270
        %v1274 = vadd.f32 %v1168, %v1271
        %v1275 = vmul.f32 %v1266, %v1199
        %v1276 = vmul.f32 %v1267, %v1200
        %v1277 = vmul.f32 %v1268, %v1201
        %v1278 = vadd.f32 %v1245, %v1275
        %v1279 = vadd.f32 %v1246, %v1276
        %v1280 = vadd.f32 %v1247, %v1277
        %v1281 = vmul.f32 %v1266, %v1208
        %v1282 = vmul.f32 %v1267, %v1209
        %v1283 = vmul.f32 %v1268, %v1210
        %v1284 = vadd.f32 %v1251, %v1281
        %v1285 = vadd.f32 %v1252, %v1282
        %v1286 = vadd.f32 %v1253, %v1283
        %v1287 = vmul.f32 %v1266, %v1217
        %v1288 = vmul.f32 %v1267, %v1218
        %v1289 = vmul.f32 %v1268, %v1219
        %v1290 = vadd.f32 %v1257, %v1287
        %v1291 = vadd.f32 %v1258, %v1288
        %v1292 = vadd.f32 %v1259, %v1289
        %v1293 = vrot.slane %v474, 1
        %v1294 = vrot.slane %v475, 1
        %v1295 = vrot.slane %v476, 1
        %v1299 = vsel %vm1238, %v1293, 0.0
        %v1300 = vsel %vm1238, %v1294, 0.0
        %v1301 = vsel %vm1238, %v1295, 0.0
        %v1302 = vmul.f32 %v1299, %v1190
        %v1303 = vmul.f32 %v1300, %v1191
        %v1304 = vmul.f32 %v1301, %v1192
        %v1305 = vadd.f32 %v1184, %v1302
        %v1306 = vadd.f32 %v1185, %v1303
        %v1307 = vadd.f32 %v1186, %v1304
        %v1308 = vmul.f32 %v1299, %v1199
        %v1309 = vmul.f32 %v1300, %v1200
        %v1310 = vmul.f32 %v1301, %v1201
        %v1311 = vadd.f32 %v1272, %v1308
        %v1312 = vadd.f32 %v1273, %v1309
        %v1313 = vadd.f32 %v1274, %v1310
        %v1314 = vmul.f32 %v1299, %v1208
        %v1315 = vmul.f32 %v1300, %v1209
        %v1316 = vmul.f32 %v1301, %v1210
        %v1317 = vadd.f32 %v1278, %v1314
        %v1318 = vadd.f32 %v1279, %v1315
        %v1319 = vadd.f32 %v1280, %v1316
        %v1320 = vmul.f32 %v1299, %v1217
        %v1321 = vmul.f32 %v1300, %v1218
        %v1322 = vmul.f32 %v1301, %v1219
        %v1323 = vadd.f32 %v1284, %v1320
        %v1324 = vadd.f32 %v1285, %v1321
        %v1325 = vadd.f32 %v1286, %v1322
        %v1326 = vmul.f32 %v1299, %v1226
        %v1327 = vmul.f32 %v1300, %v1227
        %v1328 = vmul.f32 %v1301, %v1228
        %v1329 = vadd.f32 %v1290, %v1326
        %v1330 = vadd.f32 %v1291, %v1327
        %v1331 = vadd.f32 %v1292, %v1328
        %v1332 = vrot.slane %v520, 1
        %v1333 = vrot.slane %v521, 1
        %v1334 = vrot.slane %v522, 1
        %v1338 = vsel %vm1238, %v1332, 0.0
        %v1339 = vsel %vm1238, %v1333, 0.0
        %v1340 = vsel %vm1238, %v1334, 0.0
        %v1341 = vmul.f32 %v1338, %v1190
        %v1342 = vmul.f32 %v1339, %v1191
        %v1343 = vmul.f32 %v1340, %v1192
        %v1344 = vadd.f32 %v1178, %v1341
        %v1345 = vadd.f32 %v1179, %v1342
        %v1346 = vadd.f32 %v1180, %v1343
        %v1347 = vmul.f32 %v1338, %v1199
        %v1348 = vmul.f32 %v1339, %v1200
        %v1349 = vmul.f32 %v1340, %v1201
        %v1350 = vadd.f32 %v1305, %v1347
        %v1351 = vadd.f32 %v1306, %v1348
        %v1352 = vadd.f32 %v1307, %v1349
        %v1353 = vmul.f32 %v1338, %v1208
        %v1354 = vmul.f32 %v1339, %v1209
        %v1355 = vmul.f32 %v1340, %v1210
        %v1356 = vadd.f32 %v1311, %v1353
        %v1357 = vadd.f32 %v1312, %v1354
        %v1358 = vadd.f32 %v1313, %v1355
        %v1359 = vmul.f32 %v1338, %v1217
        %v1360 = vmul.f32 %v1339, %v1218
        %v1361 = vmul.f32 %v1340, %v1219
        %v1362 = vadd.f32 %v1317, %v1359
        %v1363 = vadd.f32 %v1318, %v1360
        %v1364 = vadd.f32 %v1319, %v1361
        %v1365 = vmul.f32 %v1338, %v1226
        %v1366 = vmul.f32 %v1339, %v1227
        %v1367 = vmul.f32 %v1340, %v1228
        %v1368 = vadd.f32 %v1323, %v1365
        %v1369 = vadd.f32 %v1324, %v1366
        %v1370 = vadd.f32 %v1325, %v1367
        %v1371 = vrot.slane %v566, 1
        %v1372 = vrot.slane %v567, 1
        %v1373 = vrot.slane %v568, 1
        %v1377 = vsel %vm1238, %v1371, 0.0
        %v1378 = vsel %vm1238, %v1372, 0.0
        %v1379 = vsel %vm1238, %v1373, 0.0
        %v1380 = vmul.f32 %v1377, %v1190
        %v1381 = vmul.f32 %v1378, %v1191
        %v1382 = vmul.f32 %v1379, %v1192
        %v1383 = vadd.f32 %v1172, %v1380
        %v1384 = vadd.f32 %v1173, %v1381
        %v1385 = vadd.f32 %v1174, %v1382
        %v1386 = vmul.f32 %v1377, %v1199
        %v1387 = vmul.f32 %v1378, %v1200
        %v1388 = vmul.f32 %v1379, %v1201
        %v1389 = vadd.f32 %v1344, %v1386
        %v1390 = vadd.f32 %v1345, %v1387
        %v1391 = vadd.f32 %v1346, %v1388
        %v1392 = vmul.f32 %v1377, %v1208
        %v1393 = vmul.f32 %v1378, %v1209
        %v1394 = vmul.f32 %v1379, %v1210
        %v1395 = vadd.f32 %v1350, %v1392
        %v1396 = vadd.f32 %v1351, %v1393
        %v1397 = vadd.f32 %v1352, %v1394
        %v1398 = vmul.f32 %v1377, %v1217
        %v1399 = vmul.f32 %v1378, %v1218
        %v1400 = vmul.f32 %v1379, %v1219
        %v1401 = vadd.f32 %v1356, %v1398
        %v1402 = vadd.f32 %v1357, %v1399
        %v1403 = vadd.f32 %v1358, %v1400
        %v1404 = vmul.f32 %v1377, %v1226
        %v1405 = vmul.f32 %v1378, %v1227
        %v1406 = vmul.f32 %v1379, %v1228
        %v1407 = vadd.f32 %v1362, %v1404
        %v1408 = vadd.f32 %v1363, %v1405
        %v1409 = vadd.f32 %v1364, %v1406
        %v1410 = vrot.slane %v612, 1
        %v1411 = vrot.slane %v613, 1
        %v1412 = vrot.slane %v614, 1
        %v1416 = vsel %vm1238, %v1410, 0.0
        %v1417 = vsel %vm1238, %v1411, 0.0
        %v1418 = vsel %vm1238, %v1412, 0.0
        %v1419 = vmul.f32 %v1416, %v1199
        %v1420 = vmul.f32 %v1417, %v1200
        %v1421 = vmul.f32 %v1418, %v1201
        %v1422 = vadd.f32 %v1383, %v1419
        %v1423 = vadd.f32 %v1384, %v1420
        %v1424 = vadd.f32 %v1385, %v1421
        %v1425 = vmul.f32 %v1416, %v1208
        %v1426 = vmul.f32 %v1417, %v1209
        %v1427 = vmul.f32 %v1418, %v1210
        %v1428 = vadd.f32 %v1389, %v1425
        %v1429 = vadd.f32 %v1390, %v1426
        %v1430 = vadd.f32 %v1391, %v1427
        %v1431 = vmul.f32 %v1416, %v1217
        %v1432 = vmul.f32 %v1417, %v1218
        %v1433 = vmul.f32 %v1418, %v1219
        %v1434 = vadd.f32 %v1395, %v1431
        %v1435 = vadd.f32 %v1396, %v1432
        %v1436 = vadd.f32 %v1397, %v1433
        %v1437 = vmul.f32 %v1416, %v1226
        %v1438 = vmul.f32 %v1417, %v1227
        %v1439 = vmul.f32 %v1418, %v1228
        %v1440 = vadd.f32 %v1401, %v1437
        %v1441 = vadd.f32 %v1402, %v1438
        %v1442 = vadd.f32 %v1403, %v1439
        %v1443 = vrot.slane %v652, 1
        %v1444 = vrot.slane %v653, 1
        %v1445 = vrot.slane %v654, 1
        %v1449 = vsel %vm1238, %v1443, 0.0
        %v1450 = vsel %vm1238, %v1444, 0.0
        %v1451 = vsel %vm1238, %v1445, 0.0
        %v1452 = vmul.f32 %v1449, %v1208
        %v1453 = vmul.f32 %v1450, %v1209
        %v1454 = vmul.f32 %v1451, %v1210
        %v1455 = vadd.f32 %v1422, %v1452
        %v1456 = vadd.f32 %v1423, %v1453
        %v1457 = vadd.f32 %v1424, %v1454
        %v1458 = vmul.f32 %v1449, %v1217
        %v1459 = vmul.f32 %v1450, %v1218
        %v1460 = vmul.f32 %v1451, %v1219
        %v1461 = vadd.f32 %v1428, %v1458
        %v1462 = vadd.f32 %v1429, %v1459
        %v1463 = vadd.f32 %v1430, %v1460
        %v1464 = vmul.f32 %v1449, %v1226
        %v1465 = vmul.f32 %v1450, %v1227
        %v1466 = vmul.f32 %v1451, %v1228
        %v1467 = vadd.f32 %v1434, %v1464
        %v1468 = vadd.f32 %v1435, %v1465
        %v1469 = vadd.f32 %v1436, %v1466
        %s1470 = scalar_lea.vmem %s308, 4 [#allocation3]
        %v1471 = vld [vmem:[%s1470] ss:$8 sm:$0x7]
        %v1473 = vperm.slane %v1471, 0
        %v1474 = vperm.slane %v1471, 1
        %v1475 = vperm.slane %v1471, 2
        %s1479 = scalar_lea.vmem %s308, 25 [#allocation3]
        %v1480 = vld [vmem:[%s1479] ss:$8 sm:$0x7]
        %v1482 = vperm.slane %v1480, 0
        %v1483 = vperm.slane %v1480, 1
        %v1484 = vperm.slane %v1480, 2
        %s1488 = scalar_lea.vmem %s308, 30 [#allocation3]
        %v1489 = vld [vmem:[%s1488] ss:$8 sm:$0x7]
        %v1491 = vperm.slane %v1489, 0
        %v1492 = vperm.slane %v1489, 1
        %v1493 = vperm.slane %v1489, 2
        %s1497 = scalar_lea.vmem %s308, 51 [#allocation3]
        %v1498 = vld [vmem:[%s1497] ss:$8 sm:$0x7]
        %v1500 = vperm.slane %v1498, 0
        %v1501 = vperm.slane %v1498, 1
        %v1502 = vperm.slane %v1498, 2
        %s1506 = scalar_lea.vmem %s308, 72 [#allocation3]
        %v1507 = vld [vmem:[%s1506] ss:$8 sm:$0x7]
        %v1509 = vperm.slane %v1507, 0
        %v1510 = vperm.slane %v1507, 1
        %v1511 = vperm.slane %v1507, 2
        %v1515 = vrot.slane %v399, 2
        %v1516 = vrot.slane %v400, 2
        %v1517 = vrot.slane %v401, 2
        %vm1521 = vcmask 1044480
        %v1522 = vsel %vm1521, %v1515, 0.0
        %v1523 = vsel %vm1521, %v1516, 0.0
        %v1524 = vsel %vm1521, %v1517, 0.0
        %v1525 = vmul.f32 %v1522, %v1473
        %v1526 = vmul.f32 %v1523, %v1474
        %v1527 = vmul.f32 %v1524, %v1475
        %v1528 = vadd.f32 %v1407, %v1525
        %v1529 = vadd.f32 %v1408, %v1526
        %v1530 = vadd.f32 %v1409, %v1527
        %v1531 = vmul.f32 %v1522, %v1482
        %v1532 = vmul.f32 %v1523, %v1483
        %v1533 = vmul.f32 %v1524, %v1484
        %v1534 = vadd.f32 %v1368, %v1531
        %v1535 = vadd.f32 %v1369, %v1532
        %v1536 = vadd.f32 %v1370, %v1533
        %v1537 = vmul.f32 %v1522, %v1491
        %v1538 = vmul.f32 %v1523, %v1492
        %v1539 = vmul.f32 %v1524, %v1493
        %v1540 = vadd.f32 %v1329, %v1537
        %v1541 = vadd.f32 %v1330, %v1538
        %v1542 = vadd.f32 %v1331, %v1539
        %v1543 = vrot.slane %v434, 2
        %v1544 = vrot.slane %v435, 2
        %v1545 = vrot.slane %v436, 2
        %v1549 = vsel %vm1521, %v1543, 0.0
        %v1550 = vsel %vm1521, %v1544, 0.0
        %v1551 = vsel %vm1521, %v1545, 0.0
        %v1552 = vmul.f32 %v1549, %v1473
        %v1553 = vmul.f32 %v1550, %v1474
        %v1554 = vmul.f32 %v1551, %v1475
        %v1555 = vadd.f32 %v1440, %v1552
        %v1556 = vadd.f32 %v1441, %v1553
        %v1557 = vadd.f32 %v1442, %v1554
        %v1558 = vmul.f32 %v1549, %v1482
        %v1559 = vmul.f32 %v1550, %v1483
        %v1560 = vmul.f32 %v1551, %v1484
        %v1561 = vadd.f32 %v1528, %v1558
        %v1562 = vadd.f32 %v1529, %v1559
        %v1563 = vadd.f32 %v1530, %v1560
        %v1564 = vmul.f32 %v1549, %v1491
        %v1565 = vmul.f32 %v1550, %v1492
        %v1566 = vmul.f32 %v1551, %v1493
        %v1567 = vadd.f32 %v1534, %v1564
        %v1568 = vadd.f32 %v1535, %v1565
        %v1569 = vadd.f32 %v1536, %v1566
        %v1570 = vmul.f32 %v1549, %v1500
        %v1571 = vmul.f32 %v1550, %v1501
        %v1572 = vmul.f32 %v1551, %v1502
        %v1573 = vadd.f32 %v1540, %v1570
        %v1574 = vadd.f32 %v1541, %v1571
        %v1575 = vadd.f32 %v1542, %v1572
        %v1576 = vrot.slane %v474, 2
        %v1577 = vrot.slane %v475, 2
        %v1578 = vrot.slane %v476, 2
        %v1582 = vsel %vm1521, %v1576, 0.0
        %v1583 = vsel %vm1521, %v1577, 0.0
        %v1584 = vsel %vm1521, %v1578, 0.0
        %v1585 = vmul.f32 %v1582, %v1473
        %v1586 = vmul.f32 %v1583, %v1474
        %v1587 = vmul.f32 %v1584, %v1475
        %v1588 = vadd.f32 %v1467, %v1585
        %v1589 = vadd.f32 %v1468, %v1586
        %v1590 = vadd.f32 %v1469, %v1587
        %v1591 = vmul.f32 %v1582, %v1482
        %v1592 = vmul.f32 %v1583, %v1483
        %v1593 = vmul.f32 %v1584, %v1484
        %v1594 = vadd.f32 %v1555, %v1591
        %v1595 = vadd.f32 %v1556, %v1592
        %v1596 = vadd.f32 %v1557, %v1593
        %v1597 = vmul.f32 %v1582, %v1491
        %v1598 = vmul.f32 %v1583, %v1492
        %v1599 = vmul.f32 %v1584, %v1493
        %v1600 = vadd.f32 %v1561, %v1597
        %v1601 = vadd.f32 %v1562, %v1598
        %v1602 = vadd.f32 %v1563, %v1599
        %v1603 = vmul.f32 %v1582, %v1500
        %v1604 = vmul.f32 %v1583, %v1501
        %v1605 = vmul.f32 %v1584, %v1502
        %v1606 = vadd.f32 %v1567, %v1603
        %v1607 = vadd.f32 %v1568, %v1604
        %v1608 = vadd.f32 %v1569, %v1605
        %v1609 = vmul.f32 %v1582, %v1509
        %v1610 = vmul.f32 %v1583, %v1510
        %v1611 = vmul.f32 %v1584, %v1511
        %v1612 = vadd.f32 %v1573, %v1609
        %v1613 = vadd.f32 %v1574, %v1610
        %v1614 = vadd.f32 %v1575, %v1611
        %v1615 = vrot.slane %v520, 2
        %v1616 = vrot.slane %v521, 2
        %v1617 = vrot.slane %v522, 2
        %v1621 = vsel %vm1521, %v1615, 0.0
        %v1622 = vsel %vm1521, %v1616, 0.0
        %v1623 = vsel %vm1521, %v1617, 0.0
        %v1624 = vmul.f32 %v1621, %v1473
        %v1625 = vmul.f32 %v1622, %v1474
        %v1626 = vmul.f32 %v1623, %v1475
        %v1627 = vadd.f32 %v1461, %v1624
        %v1628 = vadd.f32 %v1462, %v1625
        %v1629 = vadd.f32 %v1463, %v1626
        %v1630 = vmul.f32 %v1621, %v1482
        %v1631 = vmul.f32 %v1622, %v1483
        %v1632 = vmul.f32 %v1623, %v1484
        %v1633 = vadd.f32 %v1588, %v1630
        %v1634 = vadd.f32 %v1589, %v1631
        %v1635 = vadd.f32 %v1590, %v1632
        %v1636 = vmul.f32 %v1621, %v1491
        %v1637 = vmul.f32 %v1622, %v1492
        %v1638 = vmul.f32 %v1623, %v1493
        %v1639 = vadd.f32 %v1594, %v1636
        %v1640 = vadd.f32 %v1595, %v1637
        %v1641 = vadd.f32 %v1596, %v1638
        %v1642 = vmul.f32 %v1621, %v1500
        %v1643 = vmul.f32 %v1622, %v1501
        %v1644 = vmul.f32 %v1623, %v1502
        %v1645 = vadd.f32 %v1600, %v1642
        %v1646 = vadd.f32 %v1601, %v1643
        %v1647 = vadd.f32 %v1602, %v1644
        %v1648 = vmul.f32 %v1621, %v1509
        %v1649 = vmul.f32 %v1622, %v1510
        %v1650 = vmul.f32 %v1623, %v1511
        %v1651 = vadd.f32 %v1606, %v1648
        %v1652 = vadd.f32 %v1607, %v1649
        %v1653 = vadd.f32 %v1608, %v1650
        %v1654 = vrot.slane %v566, 2
        %v1655 = vrot.slane %v567, 2
        %v1656 = vrot.slane %v568, 2
        %v1660 = vsel %vm1521, %v1654, 0.0
        %v1661 = vsel %vm1521, %v1655, 0.0
        %v1662 = vsel %vm1521, %v1656, 0.0
        %v1663 = vmul.f32 %v1660, %v1473
        %v1664 = vmul.f32 %v1661, %v1474
        %v1665 = vmul.f32 %v1662, %v1475
        %v1666 = vadd.f32 %v1455, %v1663
        %v1667 = vadd.f32 %v1456, %v1664
        %v1668 = vadd.f32 %v1457, %v1665
        %v1669 = vmul.f32 %v1660, %v1482
        %v1670 = vmul.f32 %v1661, %v1483
        %v1671 = vmul.f32 %v1662, %v1484
        %v1672 = vadd.f32 %v1627, %v1669
        %v1673 = vadd.f32 %v1628, %v1670
        %v1674 = vadd.f32 %v1629, %v1671
        %v1675 = vmul.f32 %v1660, %v1491
        %v1676 = vmul.f32 %v1661, %v1492
        %v1677 = vmul.f32 %v1662, %v1493
        %v1678 = vadd.f32 %v1633, %v1675
        %v1679 = vadd.f32 %v1634, %v1676
        %v1680 = vadd.f32 %v1635, %v1677
        %v1681 = vmul.f32 %v1660, %v1500
        %v1682 = vmul.f32 %v1661, %v1501
        %v1683 = vmul.f32 %v1662, %v1502
        %v1684 = vadd.f32 %v1639, %v1681
        %v1685 = vadd.f32 %v1640, %v1682
        %v1686 = vadd.f32 %v1641, %v1683
        %v1687 = vmul.f32 %v1660, %v1509
        %v1688 = vmul.f32 %v1661, %v1510
        %v1689 = vmul.f32 %v1662, %v1511
        %v1690 = vadd.f32 %v1645, %v1687
        %v1691 = vadd.f32 %v1646, %v1688
        %v1692 = vadd.f32 %v1647, %v1689
        %v1693 = vrot.slane %v612, 2
        %v1694 = vrot.slane %v613, 2
        %v1695 = vrot.slane %v614, 2
        %v1699 = vsel %vm1521, %v1693, 0.0
        %v1700 = vsel %vm1521, %v1694, 0.0
        %v1701 = vsel %vm1521, %v1695, 0.0
        %v1702 = vmul.f32 %v1699, %v1482
        %v1703 = vmul.f32 %v1700, %v1483
        %v1704 = vmul.f32 %v1701, %v1484
        %v1705 = vadd.f32 %v1666, %v1702
        %v1706 = vadd.f32 %v1667, %v1703
        %v1707 = vadd.f32 %v1668, %v1704
        %v1708 = vmul.f32 %v1699, %v1491
        %v1709 = vmul.f32 %v1700, %v1492
        %v1710 = vmul.f32 %v1701, %v1493
        %v1711 = vadd.f32 %v1672, %v1708
        %v1712 = vadd.f32 %v1673, %v1709
        %v1713 = vadd.f32 %v1674, %v1710
        %v1714 = vmul.f32 %v1699, %v1500
        %v1715 = vmul.f32 %v1700, %v1501
        %v1716 = vmul.f32 %v1701, %v1502
        %v1717 = vadd.f32 %v1678, %v1714
        %v1718 = vadd.f32 %v1679, %v1715
        %v1719 = vadd.f32 %v1680, %v1716
        %v1720 = vmul.f32 %v1699, %v1509
        %v1721 = vmul.f32 %v1700, %v1510
        %v1722 = vmul.f32 %v1701, %v1511
        %v1723 = vadd.f32 %v1684, %v1720
        %v1724 = vadd.f32 %v1685, %v1721
        %v1725 = vadd.f32 %v1686, %v1722
        %v1726 = vrot.slane %v652, 2
        %v1727 = vrot.slane %v653, 2
        %v1728 = vrot.slane %v654, 2
        %v1732 = vsel %vm1521, %v1726, 0.0
        %v1733 = vsel %vm1521, %v1727, 0.0
        %v1734 = vsel %vm1521, %v1728, 0.0
        %v1735 = vmul.f32 %v1732, %v1491
        %v1736 = vmul.f32 %v1733, %v1492
        %v1737 = vmul.f32 %v1734, %v1493
        %v1738 = vadd.f32 %v1705, %v1735
        %v1739 = vadd.f32 %v1706, %v1736
        %v1740 = vadd.f32 %v1707, %v1737
        %v1741 = vmul.f32 %v1732, %v1500
        %v1742 = vmul.f32 %v1733, %v1501
        %v1743 = vmul.f32 %v1734, %v1502
        %v1744 = vadd.f32 %v1711, %v1741
        %v1745 = vadd.f32 %v1712, %v1742
        %v1746 = vadd.f32 %v1713, %v1743
        %v1747 = vmul.f32 %v1732, %v1509
        %v1748 = vmul.f32 %v1733, %v1510
        %v1749 = vmul.f32 %v1734, %v1511
        %v1750 = vadd.f32 %v1717, %v1747
        %v1751 = vadd.f32 %v1718, %v1748
        %v1752 = vadd.f32 %v1719, %v1749
        %v1753 = vmul.f32 %v1612, %v1612
        %v1754 = vmul.f32 %v1613, %v1613
        %v1755 = vmul.f32 %v1614, %v1614
        %v1756 = vadd.f32 %v1612, %v1651
        %v1757 = vadd.f32 %v1613, %v1652
        %v1758 = vadd.f32 %v1614, %v1653
        %v1759 = vmul.f32 %v1651, %v1651
        %v1760 = vmul.f32 %v1652, %v1652
        %v1761 = vmul.f32 %v1653, %v1653
        %v1762 = vadd.f32 %v1753, %v1759
        %v1763 = vadd.f32 %v1754, %v1760
        %v1764 = vadd.f32 %v1755, %v1761
        %v1765 = vadd.f32 %v1756, %v1690
        %v1766 = vadd.f32 %v1757, %v1691
        %v1767 = vadd.f32 %v1758, %v1692
        %v1768 = vmul.f32 %v1690, %v1690
        %v1769 = vmul.f32 %v1691, %v1691
        %v1770 = vmul.f32 %v1692, %v1692
        %v1771 = vadd.f32 %v1762, %v1768
        %v1772 = vadd.f32 %v1763, %v1769
        %v1773 = vadd.f32 %v1764, %v1770
        %v1774 = vadd.f32 %v1765, %v1723
        %v1775 = vadd.f32 %v1766, %v1724
        %v1776 = vadd.f32 %v1767, %v1725
        %v1777 = vmul.f32 %v1723, %v1723
        %v1778 = vmul.f32 %v1724, %v1724
        %v1779 = vmul.f32 %v1725, %v1725
        %v1780 = vadd.f32 %v1771, %v1777
        %v1781 = vadd.f32 %v1772, %v1778
        %v1782 = vadd.f32 %v1773, %v1779
        %v1783 = vadd.f32 %v1774, %v1750
        %v1784 = vadd.f32 %v1775, %v1751
        %v1785 = vadd.f32 %v1776, %v1752
        %v1786 = vmul.f32 %v1750, %v1750
        %v1787 = vmul.f32 %v1751, %v1751
        %v1788 = vmul.f32 %v1752, %v1752
        %v1789 = vadd.f32 %v1780, %v1786
        %v1790 = vadd.f32 %v1781, %v1787
        %v1791 = vadd.f32 %v1782, %v1788
        %v1792 = vadd.f32 %v1783, %v1744
        %v1793 = vadd.f32 %v1784, %v1745
        %v1794 = vadd.f32 %v1785, %v1746
        %v1795 = vmul.f32 %v1744, %v1744
        %v1796 = vmul.f32 %v1745, %v1745
        %v1797 = vmul.f32 %v1746, %v1746
        %v1798 = vadd.f32 %v1789, %v1795
        %v1799 = vadd.f32 %v1790, %v1796
        %v1800 = vadd.f32 %v1791, %v1797
        %v1801 = vadd.f32 %v1792, %v1738
        %v1802 = vadd.f32 %v1793, %v1739
        %v1803 = vadd.f32 %v1794, %v1740
        %v1804 = vmul.f32 %v1738, %v1738
        %v1805 = vmul.f32 %v1739, %v1739
        %v1806 = vmul.f32 %v1740, %v1740
        %v1807 = vadd.f32 %v1798, %v1804
        %v1808 = vadd.f32 %v1799, %v1805
        %v1809 = vadd.f32 %v1800, %v1806
        %vm1810 = vcmask 1046528
        %v1811 = vsel %vm1810, %v1801, 0.0
        %v1812 = vrot.slane %v1811, 4
        %v1813 = vadd.f32 %v1811, %v1812
        %v1814 = vrot.slane %v1813, 2
        %v1815 = vadd.f32 %v1813, %v1814
        %v1816 = vrot.slane %v1815, 1
        %v1817 = vadd.f32 %v1815, %v1816
        %v1818 = vsel %vm1810, %v1802, 0.0
        %v1819 = vrot.slane %v1818, 4
        %v1820 = vadd.f32 %v1818, %v1819
        %v1821 = vrot.slane %v1820, 2
        %v1822 = vadd.f32 %v1820, %v1821
        %v1823 = vrot.slane %v1822, 1
        %v1824 = vadd.f32 %v1822, %v1823
        %v1825 = vsel %vm1810, %v1803, 0.0
        %v1826 = vrot.slane %v1825, 4
        %v1827 = vadd.f32 %v1825, %v1826
        %v1828 = vrot.slane %v1827, 2
        %v1829 = vadd.f32 %v1827, %v1828
        %v1830 = vrot.slane %v1829, 1
        %v1831 = vadd.f32 %v1829, %v1830
        %v1832 = vsel %vm1810, %v1807, 0.0
        %v1833 = vrot.slane %v1832, 4
        %v1834 = vadd.f32 %v1832, %v1833
        %v1835 = vrot.slane %v1834, 2
        %v1836 = vadd.f32 %v1834, %v1835
        %v1837 = vrot.slane %v1836, 1
        %v1838 = vadd.f32 %v1836, %v1837
        %v1839 = vsel %vm1810, %v1808, 0.0
        %v1840 = vrot.slane %v1839, 4
        %v1841 = vadd.f32 %v1839, %v1840
        %v1842 = vrot.slane %v1841, 2
        %v1843 = vadd.f32 %v1841, %v1842
        %v1844 = vrot.slane %v1843, 1
        %v1845 = vadd.f32 %v1843, %v1844
        %v1846 = vsel %vm1810, %v1809, 0.0
        %v1847 = vrot.slane %v1846, 4
        %v1848 = vadd.f32 %v1846, %v1847
        %v1849 = vrot.slane %v1848, 2
        %v1850 = vadd.f32 %v1848, %v1849
        %v1851 = vrot.slane %v1850, 1
        %v1852 = vadd.f32 %v1850, %v1851
        %v1853 = vmul.f32 %v1817, 0.020408163
        %v1854 = vmul.f32 %v1824, 0.020408163
        %v1855 = vmul.f32 %v1831, 0.020408163
        %v1856 = vmul.f32 %v1838, 0.020408163
        %v1857 = vmul.f32 %v1845, 0.020408163
        %v1858 = vmul.f32 %v1852, 0.020408163
        %v1859 = vmul.f32 %v1853, %v1853
        %v1860 = vmul.f32 %v1854, %v1854
        %v1861 = vmul.f32 %v1855, %v1855
        %v1862 = vsub.f32 %v1856, %v1859
        %v1863 = vsub.f32 %v1857, %v1860
        %v1864 = vsub.f32 %v1858, %v1861
        %v1865 = vadd.f32 %v1862, 0.001
        %v1866 = vadd.f32 %v1863, 0.001
        %v1867 = vadd.f32 %v1864, 0.001
        %v1868 = vrsqrt.pop %v1865
        %v1869 = vmul.f32 %v1868, %v1865
        %v1870 = vmul.f32 %v1869, %v1868
        %v1871 = vmul.f32 0.5, %v1870
        %v1872 = vsub.f32 1.5, %v1871
        %v1873 = vmul.f32 %v1868, %v1872
        %vm1874 = vweird.f32 %v1865
        %vm1875 = vweird.f32 %v1868
        %vm1876 = vmor %vm1874, %vm1875
        %v1877 = vsel %vm1876, %v1868, %v1873
        %v1878 = vrsqrt.pop %v1866
        %v1879 = vmul.f32 %v1878, %v1866
        %v1880 = vmul.f32 %v1879, %v1878
        %v1881 = vmul.f32 0.5, %v1880
        %v1882 = vsub.f32 1.5, %v1881
        %v1883 = vmul.f32 %v1878, %v1882
        %vm1884 = vweird.f32 %v1866
        %vm1885 = vweird.f32 %v1878
        %vm1886 = vmor %vm1884, %vm1885
        %v1887 = vsel %vm1886, %v1878, %v1883
        %v1888 = vrsqrt.pop %v1867
        %v1889 = vmul.f32 %v1888, %v1867
        %v1890 = vmul.f32 %v1889, %v1888
        %v1891 = vmul.f32 0.5, %v1890
        %v1892 = vsub.f32 1.5, %v1891
        %v1893 = vmul.f32 %v1888, %v1892
        %vm1894 = vweird.f32 %v1867
        %vm1895 = vweird.f32 %v1888
        %vm1896 = vmor %vm1894, %vm1895
        %v1897 = vsel %vm1896, %v1888, %v1893
        %v1898 = vld [vmem:[%s347] sm:$0x7]
        %v1900 = vperm.slane %v1898, 0
        %v1901 = vperm.slane %v1898, 1
        %v1902 = vperm.slane %v1898, 2
        %v1906 = vmul.f32 %v1877, %v1900
        %v1907 = vmul.f32 %v1887, %v1901
        %v1908 = vmul.f32 %v1897, %v1902
        %v1909 = vld [vmem:[%s352] sm:$0x7]
        %v1910 = vmul.f32 %v1853, %v1906
        %v1911 = vmul.f32 %v1854, %v1907
        %v1912 = vmul.f32 %v1855, %v1908
        %v1916 = vrot.slane %v1911, 7
        %v1917 = vrot.slane %v1912, 6
        %v1918 = vsel %vm736, %v1910, %v1916
        %v1919 = vsel %vm411, %v1918, %v1917
        %v1921 = vsub.f32 %v1909, %v1919
        %v1922 = vperm.slane %v1906, 0
        %v1923 = vperm.slane %v1907, 0
        %v1924 = vperm.slane %v1908, 0
        %v1926 = vperm.slane %v1921, 0
        %v1927 = vperm.slane %v1921, 1
        %v1928 = vperm.slane %v1921, 2
        %v1932 = vmul.f32 %v1612, %v1922
        %v1933 = vmul.f32 %v1613, %v1923
        %v1934 = vmul.f32 %v1614, %v1924
        %v1935 = vadd.f32 %v1932, %v1926
        %v1936 = vadd.f32 %v1933, %v1927
        %v1937 = vadd.f32 %v1934, %v1928
        %1938 = vst [vmem:[%s341] sm:$0x7f] %v1935
        %1939 = vst [vmem:[%s341 + $0x8] sm:$0x7f] %v1936
        %1940 = vst [vmem:[%s341 + $0x10] sm:$0x7f] %v1937
        %v1941 = vmul.f32 %v1651, %v1922
        %v1942 = vmul.f32 %v1652, %v1923
        %v1943 = vmul.f32 %v1653, %v1924
        %v1944 = vadd.f32 %v1941, %v1926
        %v1945 = vadd.f32 %v1942, %v1927
        %v1946 = vadd.f32 %v1943, %v1928
        %s1947 = scalar_lea.vmem %s341, 24 [#allocation4]
        %1948 = vst [vmem:[%s1947] sm:$0x7f] %v1944
        %1949 = vst [vmem:[%s1947 + $0x8] sm:$0x7f] %v1945
        %1950 = vst [vmem:[%s1947 + $0x10] sm:$0x7f] %v1946
        %v1951 = vmul.f32 %v1690, %v1922
        %v1952 = vmul.f32 %v1691, %v1923
        %v1953 = vmul.f32 %v1692, %v1924
        %v1954 = vadd.f32 %v1951, %v1926
        %v1955 = vadd.f32 %v1952, %v1927
        %v1956 = vadd.f32 %v1953, %v1928
        %s1957 = scalar_lea.vmem %s341, 48 [#allocation4]
        %1958 = vst [vmem:[%s1957] sm:$0x7f] %v1954
        %1959 = vst [vmem:[%s1957 + $0x8] sm:$0x7f] %v1955
        %1960 = vst [vmem:[%s1957 + $0x10] sm:$0x7f] %v1956
        %v1961 = vmul.f32 %v1723, %v1922
        %v1962 = vmul.f32 %v1724, %v1923
        %v1963 = vmul.f32 %v1725, %v1924
        %v1964 = vadd.f32 %v1961, %v1926
        %v1965 = vadd.f32 %v1962, %v1927
        %v1966 = vadd.f32 %v1963, %v1928
        %s1967 = scalar_lea.vmem %s341, 72 [#allocation4]
        %1968 = vst [vmem:[%s1967] sm:$0x7f] %v1964
        %1969 = vst [vmem:[%s1967 + $0x8] sm:$0x7f] %v1965
        %1970 = vst [vmem:[%s1967 + $0x10] sm:$0x7f] %v1966
        %v1971 = vmul.f32 %v1750, %v1922
        %v1972 = vmul.f32 %v1751, %v1923
        %v1973 = vmul.f32 %v1752, %v1924
        %v1974 = vadd.f32 %v1971, %v1926
        %v1975 = vadd.f32 %v1972, %v1927
        %v1976 = vadd.f32 %v1973, %v1928
        %s1977 = scalar_lea.vmem %s341, 96 [#allocation4]
        %1978 = vst [vmem:[%s1977] sm:$0x7f] %v1974
        %1979 = vst [vmem:[%s1977 + $0x8] sm:$0x7f] %v1975
        %1980 = vst [vmem:[%s1977 + $0x10] sm:$0x7f] %v1976
        %v1981 = vmul.f32 %v1744, %v1922
        %v1982 = vmul.f32 %v1745, %v1923
        %v1983 = vmul.f32 %v1746, %v1924
        %v1984 = vadd.f32 %v1981, %v1926
        %v1985 = vadd.f32 %v1982, %v1927
        %v1986 = vadd.f32 %v1983, %v1928
        %s1987 = scalar_lea.vmem %s341, 120 [#allocation4]
        %1988 = vst [vmem:[%s1987] sm:$0x7f] %v1984
        %1989 = vst [vmem:[%s1987 + $0x8] sm:$0x7f] %v1985
        %1990 = vst [vmem:[%s1987 + $0x10] sm:$0x7f] %v1986
        %v1991 = vmul.f32 %v1738, %v1922
        %v1992 = vmul.f32 %v1739, %v1923
        %v1993 = vmul.f32 %v1740, %v1924
        %v1994 = vadd.f32 %v1991, %v1926
        %v1995 = vadd.f32 %v1992, %v1927
        %v1996 = vadd.f32 %v1993, %v1928
        %s1997 = scalar_lea.vmem %s341, 144 [#allocation4]
        %1998 = vst [vmem:[%s1997] sm:$0x7f] %v1994
        %1999 = vst [vmem:[%s1997 + $0x8] sm:$0x7f] %v1995
        %2000 = vst [vmem:[%s1997 + $0x10] sm:$0x7f] %v1996
        %s2001 = sand.u32 %s127, 1
        %s2002 = sand.u32 %s127, 1
        %s2003 = smul.addr %s2002, 168
        %s2004 = scalar_lea.vmem [#allocation4], %s2003
        // Predicated region
        $region83: #{dwconv_bn.1} parent=73 // pred_check
          %p2005 = pneg %p137
        $region84: #{dwconv_bn.1} parent=73 // pred_check_branch
          %2007 = sbr.rel (%p2005) target = $region86
        $region85: #{dwconv_bn.1} parent=73 // pred_region
          %s2008 = smul.u32 3, %s15
          %s2009 = smul.addr %s2008, 8
          %s2010 = scalar_lea.vmem %s4, %s2009
          // Predicated region
          $region87: #{dwconv_bn.1} parent=85 // pred_check
            _
          $region88: #{dwconv_bn.1} parent=85 // pred_check_branch
            %2012 = sbr.rel (0) target = $region90
          $region89: #{dwconv_bn.1} parent=85 // pred_region
            // Predicated region
            $region91: #{dwconv_bn.1} parent=89 // pred_check
              _
            $region92: #{dwconv_bn.1} parent=89 // pred_check_branch
              %2014 = sbr.rel (0) target = $region94
            $region93: #{dwconv_bn.1} parent=89 // pred_region
              loop: start=0, step=1, limit=1
              $region95: #{dwconv_bn.1} parent=93 // loop_pre_header
                _
              $region96: #{dwconv_bn.1} parent=93 // loop_header
                %s2016 = sphi 0, %s2020
                %p2017 = scmp.ge.s32.totalorder %s2016, 1
                %s2021 = sphi %s2004, %s2004
                %s2022 = sphi %s2010, %s2010
              $region97: #{dwconv_bn.1} parent=93 // loop_header_branch
                %2019 = sbr.rel (%p2017) target = $region101
              $region98: #{dwconv_bn.1} parent=93 // loop_body
                %v2023 = vld [vmem:[%s2021] sm:$0xff]
                %2024 = vst [vmem:[%s2022] sm:$0xff] %v2023
                %v2025 = vld [vmem:[%s2021 + $0x8] sm:$0xff]
                %2026 = vst [vmem:[%s2022 + $0x8] sm:$0xff] %v2025
                %v2027 = vld [vmem:[%s2021 + $0x10] sm:$0xff]
                %2028 = vst [vmem:[%s2022 + $0x10] sm:$0xff] %v2027
                %v2029 = vld [vmem:[%s2021 + $0x18] sm:$0xff]
                %2030 = vst [vmem:[%s2022 + $0x90] sm:$0xff] %v2029
                %v2031 = vld [vmem:[%s2021 + $0x20] sm:$0xff]
                %2032 = vst [vmem:[%s2022 + $0x98] sm:$0xff] %v2031
                %v2033 = vld [vmem:[%s2021 + $0x28] sm:$0xff]
                %2034 = vst [vmem:[%s2022 + $0xa0] sm:$0xff] %v2033
                %v2035 = vld [vmem:[%s2021 + $0x30] sm:$0xff]
                %2036 = vst [vmem:[%s2022 + $0x120] sm:$0xff] %v2035
                %v2037 = vld [vmem:[%s2021 + $0x38] sm:$0xff]
                %2038 = vst [vmem:[%s2022 + $0x128] sm:$0xff] %v2037
                %v2039 = vld [vmem:[%s2021 + $0x40] sm:$0xff]
                %2040 = vst [vmem:[%s2022 + $0x130] sm:$0xff] %v2039
                %v2041 = vld [vmem:[%s2021 + $0x48] sm:$0xff]
                %2042 = vst [vmem:[%s2022 + $0x1b0] sm:$0xff] %v2041
                %v2043 = vld [vmem:[%s2021 + $0x50] sm:$0xff]
                %2044 = vst [vmem:[%s2022 + $0x1b8] sm:$0xff] %v2043
                %v2045 = vld [vmem:[%s2021 + $0x58] sm:$0xff]
                %2046 = vst [vmem:[%s2022 + $0x1c0] sm:$0xff] %v2045
                %v2047 = vld [vmem:[%s2021 + $0x60] sm:$0xff]
                %2048 = vst [vmem:[%s2022 + $0x240] sm:$0xff] %v2047
                %v2049 = vld [vmem:[%s2021 + $0x68] sm:$0xff]
                %2050 = vst [vmem:[%s2022 + $0x248] sm:$0xff] %v2049
                %v2051 = vld [vmem:[%s2021 + $0x70] sm:$0xff]
                %2052 = vst [vmem:[%s2022 + $0x250] sm:$0xff] %v2051
                %v2053 = vld [vmem:[%s2021 + $0x78] sm:$0xff]
                %2054 = vst [vmem:[%s2022 + $0x2d0] sm:$0xff] %v2053
                %v2055 = vld [vmem:[%s2021 + $0x80] sm:$0xff]
                %2056 = vst [vmem:[%s2022 + $0x2d8] sm:$0xff] %v2055
                %v2057 = vld [vmem:[%s2021 + $0x88] sm:$0xff]
                %2058 = vst [vmem:[%s2022 + $0x2e0] sm:$0xff] %v2057
                %v2059 = vld [vmem:[%s2021 + $0x90] sm:$0xff]
                %2060 = vst [vmem:[%s2022 + $0x360] sm:$0xff] %v2059
                %v2061 = vld [vmem:[%s2021 + $0x98] sm:$0xff]
                %2062 = vst [vmem:[%s2022 + $0x368] sm:$0xff] %v2061
                %v2063 = vld [vmem:[%s2021 + $0xa0] sm:$0xff]
                %2064 = vst [vmem:[%s2022 + $0x370] sm:$0xff] %v2063
              $region99: #{dwconv_bn.1} parent=93 // loop_footer
                %s2020 = sadd.s32 1, %s2016
              $region100: #{dwconv_bn.1} parent=93 // loop_footer_branch
                %2015 = sbr.rel target = $region96
              $region101: #{dwconv_bn.1} parent=93 // loop_exit
                _
            $region94: #{dwconv_bn.1} parent=89 // pred_fallthru
              _
            // Predicated region
            $region102: #{dwconv_bn.1} parent=89 // pred_check
              _
            $region103: #{dwconv_bn.1} parent=89 // pred_check_branch
              %2066 = sbr.rel target = $region105
            $region104: #{dwconv_bn.1} parent=89 // pred_region
              _
            $region105: #{dwconv_bn.1} parent=89 // pred_fallthru
              _
          $region90: #{dwconv_bn.1} parent=85 // pred_fallthru
            _
          %2067 = vnop
        $region86: #{dwconv_bn.1} parent=73 // pred_fallthru
          _
      $region74: #{dwconv_bn.1} parent=5 // pred_fallthru
        _
      %p2068 = scmp.le.s32.totalorder 2, %s10
      // Predicated region
      $region106: #{dwconv_bn.1} parent=5 // pred_check
        %p2069 = pneg %p2068
      $region107: #{dwconv_bn.1} parent=5 // pred_check_branch
        %2071 = sbr.rel (%p2069) target = $region109
      $region108: #{dwconv_bn.1} parent=5 // pred_region
        %s2072 = ssub.s32 %s10, 2
        // Predicated region
        $region110: #{dwconv_bn.1} parent=108 // pred_check
          %p2073 = pneg %p143
        $region111: #{dwconv_bn.1} parent=108 // pred_check_branch
          %2075 = sbr.rel (%p2073) target = $region113
        $region112: #{dwconv_bn.1} parent=108 // pred_region
          %s2076 = sand.u32 %s128, 1
          %s2077 = sand.u32 %s128, 1
          %s2078 = smul.addr %s2077, 168
          %s2079 = scalar_lea.vmem [#allocation4], %s2078
        $region113: #{dwconv_bn.1} parent=108 // pred_fallthru
          _
      $region109: #{dwconv_bn.1} parent=5 // pred_fallthru
        _
    $region6: #{dwconv_bn.1} parent=1 // loop_footer
      %s14 = sadd.s32 1, %s10
    $region7: #{dwconv_bn.1} parent=1 // loop_footer_branch
      %9 = sbr.rel target = $region3
    $region8: #{dwconv_bn.1} parent=1 // loop_exit
      _

</llo_original>
